<compile_context>
chip_gen: v6e
topology: v6e:2x2x1
jax: 0.10.0
libtpu: 0.0.40
codegen_flags: <defaults>
</compile_context>

<pallas_src>
import jax
import jax.numpy as jnp
from jax import lax
from jax.experimental import pallas as pl
from jax.experimental.pallas import tpu as pltpu

# ---- SemGCN architecture constants ----
J = 16              # graph nodes (skeleton joints)
HID = 32            # hid_dim
CIN, COUT = 2, 3    # coords_dim
NUM_LAYERS = 4      # residual blocks

L_HID = 2 * NUM_LAYERS          # gconvs inside residual blocks
L_BN = 1 + L_HID                # _GraphConv count (input + hidden) -> BN layers
L_TOTAL = 2 + L_HID             # all SemGraphConv layers (input + hidden + output)

COUT_PAD = 128                  # lane-dense output width (sliced back to COUT in wrapper)
NEG = -9e15                     # masked-adjacency fill (matches PyTorch reference)
BN_EPS = 1e-5                   # nn.BatchNorm1d default eps


# --------------------------- Pallas kernel ---------------------------
def semgcn_kernel(x_ref, w_in_ref, b_in_ref, w_hid_ref, b_hid_ref,
                  w_out_ref, b_out_ref, a_big_ref, diag_ref, out_ref):
    # Parameters are indexed per layer (no up-front stacked loads -> low vreg pressure).

    def sem_combine(layer, h0, h1, bias):
        # SemGraphConv epilogue with precomputed softmax:
        #   diag(A) * h0  (VPU broadcast)  +  A_offdiag_blockdiag @ h1  (one MXU matmul)  + bias
        d = diag_ref[layer]                                       # (TM, 1) f32
        nb = jnp.dot(a_big_ref[layer], h1.astype(jnp.bfloat16),
                     preferred_element_type=jnp.float32)          # (TM, C)
        return d * h0 + nb + bias

    x = x_ref[...]                                                # (TM, CIN) f32

    # ---- gconv_input (_GraphConv #0): K=2 contraction as VPU outer-product sum ----
    w_in = w_in_ref[...]                                          # (CIN, 2*HID) f32, BN folded
    h = x[:, 0:1] * w_in[0:1, :]
    for c in range(1, CIN):
        h = h + x[:, c:c + 1] * w_in[c:c + 1, :]                  # (TM, 2*HID)
    h = sem_combine(0, h[:, :HID], h[:, HID:], b_in_ref[...])
    h = jnp.maximum(h, 0.0)

    # ---- hidden _GraphConv: fused [W0|W1] matmul (bf16 in, f32 acc), BN folded, ReLU ----
    def hidden_layer(h_in, l):
        w = w_hid_ref[l]                                          # (HID, 2*HID) bf16, BN folded
        hc = jnp.dot(h_in.astype(jnp.bfloat16), w,
                     preferred_element_type=jnp.float32)          # (TM, 2*HID)
        y = sem_combine(1 + l, hc[:, :HID], hc[:, HID:], b_hid_ref[l])
        return jnp.maximum(y, 0.0)

    # ---- gconv_layers: NUM_LAYERS residual blocks, each = 2 x _GraphConv ----
    for r in range(NUM_LAYERS):
        res = h
        h = hidden_layer(h, 2 * r)
        h = hidden_layer(h, 2 * r + 1)
        h = res + h

    # ---- gconv_output: bare SemGraphConv; weights/bias zero-padded to COUT_PAD lanes ----
    hc = jnp.dot(h.astype(jnp.bfloat16), w_out_ref[...],
                 preferred_element_type=jnp.float32)              # (TM, 2*COUT_PAD)
    out_ref[...] = sem_combine(L_TOTAL - 1, hc[:, :COUT_PAD], hc[:, COUT_PAD:],
                               b_out_ref[...])


# --------------------- offline parameter preparation ---------------------
def prepare_kernel_params(p, spb):
    """Fold eval-mode BN into weights, precompute softmaxed block-diag adjacency.

    spb = samples per row block; one row block holds spb*J rows.
    All of this is parameter-only (input-independent) work done once, off the kernel's
    critical path.
    """
    eye = jnp.eye(J, dtype=jnp.float32)
    a = jax.nn.softmax(p["adj_logits"], axis=-1)                    # (L_TOTAL, J, J)
    a_nei = a * (1.0 - eye)                                         # off-diagonal part
    diag = jnp.sum(a * eye, axis=-1)                                # (L_TOTAL, J)

    # block-diagonal neighbour matrix for one row block (spb samples), per layer
    blk_eye = jnp.eye(spb, dtype=jnp.float32)
    a_big = jnp.einsum("st,ljk->lsjtk", blk_eye, a_nei).reshape(
        L_TOTAL, spb * J, spb * J)                                  # (L_TOTAL, TM, TM)
    diag_big = jnp.tile(diag, (1, spb))[..., None]                  # (L_TOTAL, TM, 1)

    # eval-mode BN fold: y -> y*s + (beta - mean*s), s = gamma*rsqrt(var+eps)
    gamma, beta = p["bn"][:, 0], p["bn"][:, 1]
    mean, var = p["bn"][:, 2], p["bn"][:, 3]
    s = gamma * lax.rsqrt(var + BN_EPS)                             # (L_BN, HID)
    shift = beta - mean * s

    # input layer (BN index 0); stays f32 (VPU outer-product path)
    s0_cat = jnp.concatenate([s[0], s[0]])                          # scale both [W0|W1] halves
    w_in = p["w_in"] * s0_cat[None, :]
    b_in = p["b_in"] * s[0][None, :] + shift[0][None, :]

    # hidden layers (BN indices 1..L_HID); bf16 MXU operands
    s_hid = s[1:]
    s_hid_cat = jnp.concatenate([s_hid, s_hid], axis=-1)            # (L_HID, 2*HID)
    w_hid = (p["w_hid"] * s_hid_cat[:, None, :]).astype(jnp.bfloat16)
    b_hid = (p["b_hid"] * s_hid + shift[1:])[:, None, :]            # (L_HID, 1, HID)

    # output layer: no BN; zero-pad channel dim to COUT_PAD for a lane-dense store
    w0o, w1o = p["w_out"][:, :COUT], p["w_out"][:, COUT:]
    zpad = jnp.zeros((HID, COUT_PAD - COUT), jnp.float32)
    w_out = jnp.concatenate([w0o, zpad, w1o, zpad], axis=-1).astype(jnp.bfloat16)
    b_out = jnp.concatenate(
        [p["b_out"], jnp.zeros((1, COUT_PAD - COUT), jnp.float32)], axis=-1)

    return dict(w_in=w_in, b_in=b_in, w_hid=w_hid, b_hid=b_hid,
                w_out=w_out, b_out=b_out,
                a_big=a_big.astype(jnp.bfloat16), diag=diag_big)


def _choose_samples_per_block(batch):
    """Largest divisor of `batch` whose row block (spb*J rows) is <= ~256 rows."""
    target = max(1, 256 // J)
    spb = 1
    for c in range(1, min(batch, target) + 1):
        if batch % c == 0:
            spb = c
    return spb


def semgcn_forward(x, raw_params):
    """x: (B, J, CIN) f32.  Returns (B, J, COUT) f32."""
    batch, j, cin = x.shape
    assert j == J and cin == CIN
    spb = _choose_samples_per_block(batch)
    tm = spb * J                       # rows per grid block
    n = batch * J
    assert tm % 8 == 0 or tm == n, "row block must fill whole sublanes"

    kp = prepare_kernel_params(raw_params, spb)
    x2 = x.reshape(n, CIN).astype(jnp.float32)

    out = pl.pallas_call(
        semgcn_kernel,
        out_shape=jax.ShapeDtypeStruct((n, COUT_PAD), jnp.float32),
        grid=(n // tm,),
        in_specs=[
            pl.BlockSpec((tm, CIN), lambda i: (i, 0)),                 # x rows
            pl.BlockSpec((CIN, 2 * HID), lambda i: (0, 0)),            # w_in   (resident)
            pl.BlockSpec((1, HID), lambda i: (0, 0)),                  # b_in   (resident)
            pl.BlockSpec((L_HID, HID, 2 * HID), lambda i: (0, 0, 0)),  # w_hid  (resident)
            pl.BlockSpec((L_HID, 1, HID), lambda i: (0, 0, 0)),        # b_hid  (resident)
            pl.BlockSpec((HID, 2 * COUT_PAD), lambda i: (0, 0)),       # w_out  (resident)
            pl.BlockSpec((1, COUT_PAD), lambda i: (0, 0)),             # b_out  (resident)
            pl.BlockSpec((L_TOTAL, tm, tm), lambda i: (0, 0, 0)),      # a_big  (resident)
            pl.BlockSpec((L_TOTAL, tm, 1), lambda i: (0, 0, 0)),       # diag   (resident)
        ],
        out_specs=pl.BlockSpec((tm, COUT_PAD), lambda i: (i, 0)),
        compiler_params=pltpu.CompilerParams(
            dimension_semantics=("parallel",)),                        # shard blocks across TCs
    )(x2, kp["w_in"], kp["b_in"], kp["w_hid"], kp["b_hid"],
      kp["w_out"], kp["b_out"], kp["a_big"], kp["diag"])

    return out[:, :COUT].reshape(batch, J, COUT)


# ---------- pure-JAX reference (mirrors the PyTorch forward, eval mode) ----------
def _ref_sem_graph_conv(x3, w_cat, bias_row, adj_logits, out_dim):
    h = jnp.einsum("bji,io->bjo", x3, w_cat)
    h0, h1 = h[..., :out_dim], h[..., out_dim:]
    a = jax.nn.softmax(adj_logits, axis=-1)
    eye = jnp.eye(J, dtype=jnp.float32)
    out = (jnp.einsum("jk,bko->bjo", a * eye, h0)
           + jnp.einsum("jk,bko->bjo", a * (1.0 - eye), h1))
    return out + bias_row.reshape(1, 1, out_dim)


def _ref_graph_conv(x3, w_cat, bias_row, adj_logits, bn_l):
    y = _ref_sem_graph_conv(x3, w_cat, bias_row, adj_logits, HID)
    gamma, beta, mean, var = bn_l[0], bn_l[1], bn_l[2], bn_l[3]
    y = (y - mean) / jnp.sqrt(var + BN_EPS) * gamma + beta
    return jnp.maximum(y, 0.0)


def semgcn_reference(x, p):
    h = _ref_graph_conv(x, p["w_in"], p["b_in"], p["adj_logits"][0], p["bn"][0])
    for r in range(NUM_LAYERS):
        l1, l2 = 2 * r, 2 * r + 1
        res = h
        h = _ref_graph_conv(res, p["w_hid"][l1], p["b_hid"][l1],
                            p["adj_logits"][1 + l1], p["bn"][1 + l1])
        h = _ref_graph_conv(h, p["w_hid"][l2], p["b_hid"][l2],
                            p["adj_logits"][1 + l2], p["bn"][1 + l2])
        h = res + h
    return _ref_sem_graph_conv(h, p["w_out"], p["b_out"],
                               p["adj_logits"][L_TOTAL - 1], COUT)


if __name__ == "__main__":
    B = 2   # small demo batch; semgcn_forward handles any batch (row-block grid)

    key = jax.random.PRNGKey(0)
    ks = jax.random.split(key, 12)

    # adjacency: chain skeleton with self-loops (symmetric); mask shared across layers,
    # each SemGraphConv layer has its own learned edge weights e (PyTorch: adj[m] = e).
    adj_mask = (jnp.eye(J, dtype=bool)
                | jnp.eye(J, k=1, dtype=bool)
                | jnp.eye(J, k=-1, dtype=bool))
    e_dense = 1.0 + 0.1 * jax.random.normal(ks[0], (L_TOTAL, J, J), jnp.float32)
    adj_logits = jnp.where(adj_mask[None], e_dense, jnp.float32(NEG))

    params = {
        "adj_logits": adj_logits,
        # every weight is stored as [W0 | W1] concatenated along the output dim
        "w_in": 0.3 * jax.random.normal(ks[1], (CIN, 2 * HID), jnp.float32),
        "b_in": 0.1 * jax.random.normal(ks[2], (1, HID), jnp.float32),
        "w_hid": 0.15 * jax.random.normal(ks[3], (L_HID, HID, 2 * HID), jnp.float32),
        "b_hid": 0.1 * jax.random.normal(ks[4], (L_HID, HID), jnp.float32),
        "w_out": 0.15 * jax.random.normal(ks[5], (HID, 2 * COUT), jnp.float32),
        "b_out": 0.1 * jax.random.normal(ks[6], (1, COUT), jnp.float32),
        # BatchNorm1d eval-mode params: gamma, beta, running_mean, running_var
        "bn": jnp.stack([
            1.0 + 0.1 * jax.random.normal(ks[7], (L_BN, HID), jnp.float32),   # gamma
            0.1 * jax.random.normal(ks[8], (L_BN, HID), jnp.float32),         # beta
            0.1 * jax.random.normal(ks[9], (L_BN, HID), jnp.float32),         # running_mean
            jnp.abs(1.0 + 0.1 * jax.random.normal(ks[10], (L_BN, HID), jnp.float32)),  # running_var
        ], axis=1),                                                           # (L_BN, 4, HID)
    }

    x = jax.random.normal(ks[11], (B, J, CIN), jnp.float32)   # 2D joint coords per node

    out = semgcn_forward(x, params)
    jax.block_until_ready(out)

    assert out.shape == (B, J, COUT)
    assert out.dtype == jnp.float32
    assert bool(jnp.all(jnp.isfinite(out)))

    ref = semgcn_reference(x, params)
    # bf16 MXU inputs (per perf feedback) loosen exact f32 parity slightly -> 2e-2 tolerance.
    assert bool(jnp.allclose(out, ref, rtol=2e-2, atol=2e-2)), "mismatch vs pure-JAX reference"

    print("KERNEL_OK")
</pallas_src>

<mosaic_0001>
module attributes {stable_mosaic.version = 11 : i64} {
  func.func @semgcn_kernel(%arg0: i32, %arg1: memref<32x2xf32, #tpu.memory_space<vmem>>, %arg2: memref<2x64xf32, #tpu.memory_space<vmem>>, %arg3: memref<1x32xf32, #tpu.memory_space<vmem>>, %arg4: memref<8x32x64xbf16, #tpu.memory_space<vmem>>, %arg5: memref<8x1x32xf32, #tpu.memory_space<vmem>>, %arg6: memref<32x256xbf16, #tpu.memory_space<vmem>>, %arg7: memref<1x128xf32, #tpu.memory_space<vmem>>, %arg8: memref<10x32x32xbf16, #tpu.memory_space<vmem>>, %arg9: memref<10x32x1xf32, #tpu.memory_space<vmem>>, %arg10: memref<32x128xf32, #tpu.memory_space<vmem>>) attributes {dimension_semantics = [#tpu.dimension_semantics<parallel>], iteration_bounds = array<i64: 1>, scalar_prefetch = 0 : i64, scratch_operands = 0 : i64, tpu.core_type = #tpu.core_type<tc>, window_params = [{transform_indices = @transform_0, window_bounds = array<i64: 32, 2>}, {pipeline_mode = #tpu.pipeline_mode<synchronous>, transform_indices = @transform_1, window_bounds = array<i64: 2, 64>}, {pipeline_mode = #tpu.pipeline_mode<synchronous>, transform_indices = @transform_2, window_bounds = array<i64: 1, 32>}, {pipeline_mode = #tpu.pipeline_mode<synchronous>, transform_indices = @transform_3, window_bounds = array<i64: 8, 32, 64>}, {pipeline_mode = #tpu.pipeline_mode<synchronous>, transform_indices = @transform_4, window_bounds = array<i64: 8, 1, 32>}, {pipeline_mode = #tpu.pipeline_mode<synchronous>, transform_indices = @transform_5, window_bounds = array<i64: 32, 256>}, {pipeline_mode = #tpu.pipeline_mode<synchronous>, transform_indices = @transform_6, window_bounds = array<i64: 1, 128>}, {pipeline_mode = #tpu.pipeline_mode<synchronous>, transform_indices = @transform_7, window_bounds = array<i64: 10, 32, 32>}, {pipeline_mode = #tpu.pipeline_mode<synchronous>, transform_indices = @transform_8, window_bounds = array<i64: 10, 32, 1>}, {transform_indices = @transform_9, window_bounds = array<i64: 32, 128>}]} {
    %c0 = arith.constant 0 : index
    %c0_0 = arith.constant 0 : index
    %0 = vector.load %arg1[%c0, %c0_0] : memref<32x2xf32, #tpu.memory_space<vmem>>, vector<32x2xf32>
    %c0_1 = arith.constant 0 : index
    %c0_2 = arith.constant 0 : index
    %1 = vector.load %arg2[%c0_1, %c0_2] : memref<2x64xf32, #tpu.memory_space<vmem>>, vector<2x64xf32>
    %2 = vector.extract_strided_slice %0 {offsets = [0, 0], sizes = [32, 1], strides = [1, 1]} : vector<32x2xf32> to vector<32x1xf32>
    %3 = vector.extract_strided_slice %1 {offsets = [0, 0], sizes = [1, 64], strides = [1, 1]} : vector<2x64xf32> to vector<1x64xf32>
    %4 = vector.broadcast %2 : vector<32x1xf32> to vector<32x64xf32>
    %5 = vector.broadcast %3 : vector<1x64xf32> to vector<32x64xf32>
    %6 = arith.mulf %4, %5 : vector<32x64xf32>
    %7 = vector.extract_strided_slice %0 {offsets = [0, 1], sizes = [32, 1], strides = [1, 1]} : vector<32x2xf32> to vector<32x1xf32>
    %8 = vector.extract_strided_slice %1 {offsets = [1, 0], sizes = [1, 64], strides = [1, 1]} : vector<2x64xf32> to vector<1x64xf32>
    %9 = vector.broadcast %7 : vector<32x1xf32> to vector<32x64xf32>
    %10 = vector.broadcast %8 : vector<1x64xf32> to vector<32x64xf32>
    %11 = arith.mulf %9, %10 : vector<32x64xf32>
    %12 = arith.addf %6, %11 : vector<32x64xf32>
    %13 = vector.extract_strided_slice %12 {offsets = [0, 0], sizes = [32, 32], strides = [1, 1]} : vector<32x64xf32> to vector<32x32xf32>
    %14 = vector.extract_strided_slice %12 {offsets = [0, 32], sizes = [32, 32], strides = [1, 1]} : vector<32x64xf32> to vector<32x32xf32>
    %c0_3 = arith.constant 0 : index
    %c0_4 = arith.constant 0 : index
    %15 = vector.load %arg3[%c0_3, %c0_4] : memref<1x32xf32, #tpu.memory_space<vmem>>, vector<1x32xf32>
    %c0_5 = arith.constant 0 : index
    %c0_6 = arith.constant 0 : index
    %c0_7 = arith.constant 0 : index
    %16 = vector.load %arg9[%c0_5, %c0_6, %c0_7] : memref<10x32x1xf32, #tpu.memory_space<vmem>>, vector<1x32x1xf32>
    %17 = vector.shape_cast %16 : vector<1x32x1xf32> to vector<32x1xf32>
    %c0_8 = arith.constant 0 : index
    %c0_9 = arith.constant 0 : index
    %c0_10 = arith.constant 0 : index
    %18 = vector.load %arg8[%c0_8, %c0_9, %c0_10] : memref<10x32x32xbf16, #tpu.memory_space<vmem>>, vector<1x32x32xbf16>
    %19 = vector.shape_cast %18 : vector<1x32x32xbf16> to vector<32x32xbf16>
    %20 = arith.truncf %14 : vector<32x32xf32> to vector<32x32xbf16>
    %cst = arith.constant dense<0.000000e+00> : vector<32x32xf32>
    %21 = tpu.matmul %19, %20, %cst {dimension_numbers = #tpu.dot_dimension_numbers<[1], [0], [0], [1], [0, 0, 1, 1], [], []>} : vector<32x32xbf16>, vector<32x32xbf16>, vector<32x32xf32> -> vector<32x32xf32>
    %22 = vector.broadcast %17 : vector<32x1xf32> to vector<32x32xf32>
    %23 = arith.mulf %22, %13 : vector<32x32xf32>
    %24 = arith.addf %23, %21 : vector<32x32xf32>
    %25 = vector.broadcast %15 : vector<1x32xf32> to vector<32x32xf32>
    %26 = arith.addf %24, %25 : vector<32x32xf32>
    %cst_11 = arith.constant 0.000000e+00 : f32
    %27 = vector.broadcast %cst_11 : f32 to vector<32x32xf32>
    %28 = arith.maximumf %26, %27 : vector<32x32xf32>
    %c0_12 = arith.constant 0 : index
    %c0_13 = arith.constant 0 : index
    %c0_14 = arith.constant 0 : index
    %29 = vector.load %arg4[%c0_12, %c0_13, %c0_14] : memref<8x32x64xbf16, #tpu.memory_space<vmem>>, vector<1x32x64xbf16>
    %30 = vector.shape_cast %29 : vector<1x32x64xbf16> to vector<32x64xbf16>
    %31 = arith.truncf %28 : vector<32x32xf32> to vector<32x32xbf16>
    %cst_15 = arith.constant dense<0.000000e+00> : vector<32x64xf32>
    %32 = tpu.matmul %31, %30, %cst_15 {dimension_numbers = #tpu.dot_dimension_numbers<[1], [0], [0], [1], [0, 0, 1, 1], [], []>} : vector<32x32xbf16>, vector<32x64xbf16>, vector<32x64xf32> -> vector<32x64xf32>
    %33 = vector.extract_strided_slice %32 {offsets = [0, 0], sizes = [32, 32], strides = [1, 1]} : vector<32x64xf32> to vector<32x32xf32>
    %34 = vector.extract_strided_slice %32 {offsets = [0, 32], sizes = [32, 32], strides = [1, 1]} : vector<32x64xf32> to vector<32x32xf32>
    %c0_16 = arith.constant 0 : index
    %c0_17 = arith.constant 0 : index
    %c0_18 = arith.constant 0 : index
    %35 = vector.load %arg5[%c0_16, %c0_17, %c0_18] : memref<8x1x32xf32, #tpu.memory_space<vmem>>, vector<1x1x32xf32>
    %36 = vector.shape_cast %35 : vector<1x1x32xf32> to vector<1x32xf32>
    %c1 = arith.constant 1 : index
    %c0_19 = arith.constant 0 : index
    %c0_20 = arith.constant 0 : index
    %37 = vector.load %arg9[%c1, %c0_19, %c0_20] : memref<10x32x1xf32, #tpu.memory_space<vmem>>, vector<1x32x1xf32>
    %38 = vector.shape_cast %37 : vector<1x32x1xf32> to vector<32x1xf32>
    %c1_21 = arith.constant 1 : index
    %c0_22 = arith.constant 0 : index
    %c0_23 = arith.constant 0 : index
    %39 = vector.load %arg8[%c1_21, %c0_22, %c0_23] : memref<10x32x32xbf16, #tpu.memory_space<vmem>>, vector<1x32x32xbf16>
    %40 = vector.shape_cast %39 : vector<1x32x32xbf16> to vector<32x32xbf16>
    %41 = arith.truncf %34 : vector<32x32xf32> to vector<32x32xbf16>
    %cst_24 = arith.constant dense<0.000000e+00> : vector<32x32xf32>
    %42 = tpu.matmul %40, %41, %cst_24 {dimension_numbers = #tpu.dot_dimension_numbers<[1], [0], [0], [1], [0, 0, 1, 1], [], []>} : vector<32x32xbf16>, vector<32x32xbf16>, vector<32x32xf32> -> vector<32x32xf32>
    %43 = vector.broadcast %38 : vector<32x1xf32> to vector<32x32xf32>
    %44 = arith.mulf %43, %33 : vector<32x32xf32>
    %45 = arith.addf %44, %42 : vector<32x32xf32>
    %46 = vector.broadcast %36 : vector<1x32xf32> to vector<32x32xf32>
    %47 = arith.addf %45, %46 : vector<32x32xf32>
    %cst_25 = arith.constant 0.000000e+00 : f32
    %48 = vector.broadcast %cst_25 : f32 to vector<32x32xf32>
    %49 = arith.maximumf %47, %48 : vector<32x32xf32>
    %c1_26 = arith.constant 1 : index
    %c0_27 = arith.constant 0 : index
    %c0_28 = arith.constant 0 : index
    %50 = vector.load %arg4[%c1_26, %c0_27, %c0_28] : memref<8x32x64xbf16, #tpu.memory_space<vmem>>, vector<1x32x64xbf16>
    %51 = vector.shape_cast %50 : vector<1x32x64xbf16> to vector<32x64xbf16>
    %52 = arith.truncf %49 : vector<32x32xf32> to vector<32x32xbf16>
    %cst_29 = arith.constant dense<0.000000e+00> : vector<32x64xf32>
    %53 = tpu.matmul %52, %51, %cst_29 {dimension_numbers = #tpu.dot_dimension_numbers<[1], [0], [0], [1], [0, 0, 1, 1], [], []>} : vector<32x32xbf16>, vector<32x64xbf16>, vector<32x64xf32> -> vector<32x64xf32>
    %54 = vector.extract_strided_slice %53 {offsets = [0, 0], sizes = [32, 32], strides = [1, 1]} : vector<32x64xf32> to vector<32x32xf32>
    %55 = vector.extract_strided_slice %53 {offsets = [0, 32], sizes = [32, 32], strides = [1, 1]} : vector<32x64xf32> to vector<32x32xf32>
    %c1_30 = arith.constant 1 : index
    %c0_31 = arith.constant 0 : index
    %c0_32 = arith.constant 0 : index
    %56 = vector.load %arg5[%c1_30, %c0_31, %c0_32] : memref<8x1x32xf32, #tpu.memory_space<vmem>>, vector<1x1x32xf32>
    %57 = vector.shape_cast %56 : vector<1x1x32xf32> to vector<1x32xf32>
    %c2 = arith.constant 2 : index
    %c0_33 = arith.constant 0 : index
    %c0_34 = arith.constant 0 : index
    %58 = vector.load %arg9[%c2, %c0_33, %c0_34] : memref<10x32x1xf32, #tpu.memory_space<vmem>>, vector<1x32x1xf32>
    %59 = vector.shape_cast %58 : vector<1x32x1xf32> to vector<32x1xf32>
    %c2_35 = arith.constant 2 : index
    %c0_36 = arith.constant 0 : index
    %c0_37 = arith.constant 0 : index
    %60 = vector.load %arg8[%c2_35, %c0_36, %c0_37] : memref<10x32x32xbf16, #tpu.memory_space<vmem>>, vector<1x32x32xbf16>
    %61 = vector.shape_cast %60 : vector<1x32x32xbf16> to vector<32x32xbf16>
    %62 = arith.truncf %55 : vector<32x32xf32> to vector<32x32xbf16>
    %cst_38 = arith.constant dense<0.000000e+00> : vector<32x32xf32>
    %63 = tpu.matmul %61, %62, %cst_38 {dimension_numbers = #tpu.dot_dimension_numbers<[1], [0], [0], [1], [0, 0, 1, 1], [], []>} : vector<32x32xbf16>, vector<32x32xbf16>, vector<32x32xf32> -> vector<32x32xf32>
    %64 = vector.broadcast %59 : vector<32x1xf32> to vector<32x32xf32>
    %65 = arith.mulf %64, %54 : vector<32x32xf32>
    %66 = arith.addf %65, %63 : vector<32x32xf32>
    %67 = vector.broadcast %57 : vector<1x32xf32> to vector<32x32xf32>
    %68 = arith.addf %66, %67 : vector<32x32xf32>
    %cst_39 = arith.constant 0.000000e+00 : f32
    %69 = vector.broadcast %cst_39 : f32 to vector<32x32xf32>
    %70 = arith.maximumf %68, %69 : vector<32x32xf32>
    %71 = arith.addf %28, %70 : vector<32x32xf32>
    %c2_40 = arith.constant 2 : index
    %c0_41 = arith.constant 0 : index
    %c0_42 = arith.constant 0 : index
    %72 = vector.load %arg4[%c2_40, %c0_41, %c0_42] : memref<8x32x64xbf16, #tpu.memory_space<vmem>>, vector<1x32x64xbf16>
    %73 = vector.shape_cast %72 : vector<1x32x64xbf16> to vector<32x64xbf16>
    %74 = arith.truncf %71 : vector<32x32xf32> to vector<32x32xbf16>
    %cst_43 = arith.constant dense<0.000000e+00> : vector<32x64xf32>
    %75 = tpu.matmul %74, %73, %cst_43 {dimension_numbers = #tpu.dot_dimension_numbers<[1], [0], [0], [1], [0, 0, 1, 1], [], []>} : vector<32x32xbf16>, vector<32x64xbf16>, vector<32x64xf32> -> vector<32x64xf32>
    %76 = vector.extract_strided_slice %75 {offsets = [0, 0], sizes = [32, 32], strides = [1, 1]} : vector<32x64xf32> to vector<32x32xf32>
    %77 = vector.extract_strided_slice %75 {offsets = [0, 32], sizes = [32, 32], strides = [1, 1]} : vector<32x64xf32> to vector<32x32xf32>
    %c2_44 = arith.constant 2 : index
    %c0_45 = arith.constant 0 : index
    %c0_46 = arith.constant 0 : index
    %78 = vector.load %arg5[%c2_44, %c0_45, %c0_46] : memref<8x1x32xf32, #tpu.memory_space<vmem>>, vector<1x1x32xf32>
    %79 = vector.shape_cast %78 : vector<1x1x32xf32> to vector<1x32xf32>
    %c3 = arith.constant 3 : index
    %c0_47 = arith.constant 0 : index
    %c0_48 = arith.constant 0 : index
    %80 = vector.load %arg9[%c3, %c0_47, %c0_48] : memref<10x32x1xf32, #tpu.memory_space<vmem>>, vector<1x32x1xf32>
    %81 = vector.shape_cast %80 : vector<1x32x1xf32> to vector<32x1xf32>
    %c3_49 = arith.constant 3 : index
    %c0_50 = arith.constant 0 : index
    %c0_51 = arith.constant 0 : index
    %82 = vector.load %arg8[%c3_49, %c0_50, %c0_51] : memref<10x32x32xbf16, #tpu.memory_space<vmem>>, vector<1x32x32xbf16>
    %83 = vector.shape_cast %82 : vector<1x32x32xbf16> to vector<32x32xbf16>
    %84 = arith.truncf %77 : vector<32x32xf32> to vector<32x32xbf16>
    %cst_52 = arith.constant dense<0.000000e+00> : vector<32x32xf32>
    %85 = tpu.matmul %83, %84, %cst_52 {dimension_numbers = #tpu.dot_dimension_numbers<[1], [0], [0], [1], [0, 0, 1, 1], [], []>} : vector<32x32xbf16>, vector<32x32xbf16>, vector<32x32xf32> -> vector<32x32xf32>
    %86 = vector.broadcast %81 : vector<32x1xf32> to vector<32x32xf32>
    %87 = arith.mulf %86, %76 : vector<32x32xf32>
    %88 = arith.addf %87, %85 : vector<32x32xf32>
    %89 = vector.broadcast %79 : vector<1x32xf32> to vector<32x32xf32>
    %90 = arith.addf %88, %89 : vector<32x32xf32>
    %cst_53 = arith.constant 0.000000e+00 : f32
    %91 = vector.broadcast %cst_53 : f32 to vector<32x32xf32>
    %92 = arith.maximumf %90, %91 : vector<32x32xf32>
    %c3_54 = arith.constant 3 : index
    %c0_55 = arith.constant 0 : index
    %c0_56 = arith.constant 0 : index
    %93 = vector.load %arg4[%c3_54, %c0_55, %c0_56] : memref<8x32x64xbf16, #tpu.memory_space<vmem>>, vector<1x32x64xbf16>
    %94 = vector.shape_cast %93 : vector<1x32x64xbf16> to vector<32x64xbf16>
    %95 = arith.truncf %92 : vector<32x32xf32> to vector<32x32xbf16>
    %cst_57 = arith.constant dense<0.000000e+00> : vector<32x64xf32>
    %96 = tpu.matmul %95, %94, %cst_57 {dimension_numbers = #tpu.dot_dimension_numbers<[1], [0], [0], [1], [0, 0, 1, 1], [], []>} : vector<32x32xbf16>, vector<32x64xbf16>, vector<32x64xf32> -> vector<32x64xf32>
    %97 = vector.extract_strided_slice %96 {offsets = [0, 0], sizes = [32, 32], strides = [1, 1]} : vector<32x64xf32> to vector<32x32xf32>
    %98 = vector.extract_strided_slice %96 {offsets = [0, 32], sizes = [32, 32], strides = [1, 1]} : vector<32x64xf32> to vector<32x32xf32>
    %c3_58 = arith.constant 3 : index
    %c0_59 = arith.constant 0 : index
    %c0_60 = arith.constant 0 : index
    %99 = vector.load %arg5[%c3_58, %c0_59, %c0_60] : memref<8x1x32xf32, #tpu.memory_space<vmem>>, vector<1x1x32xf32>
    %100 = vector.shape_cast %99 : vector<1x1x32xf32> to vector<1x32xf32>
    %c4 = arith.constant 4 : index
    %c0_61 = arith.constant 0 : index
    %c0_62 = arith.constant 0 : index
    %101 = vector.load %arg9[%c4, %c0_61, %c0_62] : memref<10x32x1xf32, #tpu.memory_space<vmem>>, vector<1x32x1xf32>
    %102 = vector.shape_cast %101 : vector<1x32x1xf32> to vector<32x1xf32>
    %c4_63 = arith.constant 4 : index
    %c0_64 = arith.constant 0 : index
    %c0_65 = arith.constant 0 : index
    %103 = vector.load %arg8[%c4_63, %c0_64, %c0_65] : memref<10x32x32xbf16, #tpu.memory_space<vmem>>, vector<1x32x32xbf16>
    %104 = vector.shape_cast %103 : vector<1x32x32xbf16> to vector<32x32xbf16>
    %105 = arith.truncf %98 : vector<32x32xf32> to vector<32x32xbf16>
    %cst_66 = arith.constant dense<0.000000e+00> : vector<32x32xf32>
    %106 = tpu.matmul %104, %105, %cst_66 {dimension_numbers = #tpu.dot_dimension_numbers<[1], [0], [0], [1], [0, 0, 1, 1], [], []>} : vector<32x32xbf16>, vector<32x32xbf16>, vector<32x32xf32> -> vector<32x32xf32>
    %107 = vector.broadcast %102 : vector<32x1xf32> to vector<32x32xf32>
    %108 = arith.mulf %107, %97 : vector<32x32xf32>
    %109 = arith.addf %108, %106 : vector<32x32xf32>
    %110 = vector.broadcast %100 : vector<1x32xf32> to vector<32x32xf32>
    %111 = arith.addf %109, %110 : vector<32x32xf32>
    %cst_67 = arith.constant 0.000000e+00 : f32
    %112 = vector.broadcast %cst_67 : f32 to vector<32x32xf32>
    %113 = arith.maximumf %111, %112 : vector<32x32xf32>
    %114 = arith.addf %71, %113 : vector<32x32xf32>
    %c4_68 = arith.constant 4 : index
    %c0_69 = arith.constant 0 : index
    %c0_70 = arith.constant 0 : index
    %115 = vector.load %arg4[%c4_68, %c0_69, %c0_70] : memref<8x32x64xbf16, #tpu.memory_space<vmem>>, vector<1x32x64xbf16>
    %116 = vector.shape_cast %115 : vector<1x32x64xbf16> to vector<32x64xbf16>
    %117 = arith.truncf %114 : vector<32x32xf32> to vector<32x32xbf16>
    %cst_71 = arith.constant dense<0.000000e+00> : vector<32x64xf32>
    %118 = tpu.matmul %117, %116, %cst_71 {dimension_numbers = #tpu.dot_dimension_numbers<[1], [0], [0], [1], [0, 0, 1, 1], [], []>} : vector<32x32xbf16>, vector<32x64xbf16>, vector<32x64xf32> -> vector<32x64xf32>
    %119 = vector.extract_strided_slice %118 {offsets = [0, 0], sizes = [32, 32], strides = [1, 1]} : vector<32x64xf32> to vector<32x32xf32>
    %120 = vector.extract_strided_slice %118 {offsets = [0, 32], sizes = [32, 32], strides = [1, 1]} : vector<32x64xf32> to vector<32x32xf32>
    %c4_72 = arith.constant 4 : index
    %c0_73 = arith.constant 0 : index
    %c0_74 = arith.constant 0 : index
    %121 = vector.load %arg5[%c4_72, %c0_73, %c0_74] : memref<8x1x32xf32, #tpu.memory_space<vmem>>, vector<1x1x32xf32>
    %122 = vector.shape_cast %121 : vector<1x1x32xf32> to vector<1x32xf32>
    %c5 = arith.constant 5 : index
    %c0_75 = arith.constant 0 : index
    %c0_76 = arith.constant 0 : index
    %123 = vector.load %arg9[%c5, %c0_75, %c0_76] : memref<10x32x1xf32, #tpu.memory_space<vmem>>, vector<1x32x1xf32>
    %124 = vector.shape_cast %123 : vector<1x32x1xf32> to vector<32x1xf32>
    %c5_77 = arith.constant 5 : index
    %c0_78 = arith.constant 0 : index
    %c0_79 = arith.constant 0 : index
    %125 = vector.load %arg8[%c5_77, %c0_78, %c0_79] : memref<10x32x32xbf16, #tpu.memory_space<vmem>>, vector<1x32x32xbf16>
    %126 = vector.shape_cast %125 : vector<1x32x32xbf16> to vector<32x32xbf16>
    %127 = arith.truncf %120 : vector<32x32xf32> to vector<32x32xbf16>
    %cst_80 = arith.constant dense<0.000000e+00> : vector<32x32xf32>
    %128 = tpu.matmul %126, %127, %cst_80 {dimension_numbers = #tpu.dot_dimension_numbers<[1], [0], [0], [1], [0, 0, 1, 1], [], []>} : vector<32x32xbf16>, vector<32x32xbf16>, vector<32x32xf32> -> vector<32x32xf32>
    %129 = vector.broadcast %124 : vector<32x1xf32> to vector<32x32xf32>
    %130 = arith.mulf %129, %119 : vector<32x32xf32>
    %131 = arith.addf %130, %128 : vector<32x32xf32>
    %132 = vector.broadcast %122 : vector<1x32xf32> to vector<32x32xf32>
    %133 = arith.addf %131, %132 : vector<32x32xf32>
    %cst_81 = arith.constant 0.000000e+00 : f32
    %134 = vector.broadcast %cst_81 : f32 to vector<32x32xf32>
    %135 = arith.maximumf %133, %134 : vector<32x32xf32>
    %c5_82 = arith.constant 5 : index
    %c0_83 = arith.constant 0 : index
    %c0_84 = arith.constant 0 : index
    %136 = vector.load %arg4[%c5_82, %c0_83, %c0_84] : memref<8x32x64xbf16, #tpu.memory_space<vmem>>, vector<1x32x64xbf16>
    %137 = vector.shape_cast %136 : vector<1x32x64xbf16> to vector<32x64xbf16>
    %138 = arith.truncf %135 : vector<32x32xf32> to vector<32x32xbf16>
    %cst_85 = arith.constant dense<0.000000e+00> : vector<32x64xf32>
    %139 = tpu.matmul %138, %137, %cst_85 {dimension_numbers = #tpu.dot_dimension_numbers<[1], [0], [0], [1], [0, 0, 1, 1], [], []>} : vector<32x32xbf16>, vector<32x64xbf16>, vector<32x64xf32> -> vector<32x64xf32>
    %140 = vector.extract_strided_slice %139 {offsets = [0, 0], sizes = [32, 32], strides = [1, 1]} : vector<32x64xf32> to vector<32x32xf32>
    %141 = vector.extract_strided_slice %139 {offsets = [0, 32], sizes = [32, 32], strides = [1, 1]} : vector<32x64xf32> to vector<32x32xf32>
    %c5_86 = arith.constant 5 : index
    %c0_87 = arith.constant 0 : index
    %c0_88 = arith.constant 0 : index
    %142 = vector.load %arg5[%c5_86, %c0_87, %c0_88] : memref<8x1x32xf32, #tpu.memory_space<vmem>>, vector<1x1x32xf32>
    %143 = vector.shape_cast %142 : vector<1x1x32xf32> to vector<1x32xf32>
    %c6 = arith.constant 6 : index
    %c0_89 = arith.constant 0 : index
    %c0_90 = arith.constant 0 : index
    %144 = vector.load %arg9[%c6, %c0_89, %c0_90] : memref<10x32x1xf32, #tpu.memory_space<vmem>>, vector<1x32x1xf32>
    %145 = vector.shape_cast %144 : vector<1x32x1xf32> to vector<32x1xf32>
    %c6_91 = arith.constant 6 : index
    %c0_92 = arith.constant 0 : index
    %c0_93 = arith.constant 0 : index
    %146 = vector.load %arg8[%c6_91, %c0_92, %c0_93] : memref<10x32x32xbf16, #tpu.memory_space<vmem>>, vector<1x32x32xbf16>
    %147 = vector.shape_cast %146 : vector<1x32x32xbf16> to vector<32x32xbf16>
    %148 = arith.truncf %141 : vector<32x32xf32> to vector<32x32xbf16>
    %cst_94 = arith.constant dense<0.000000e+00> : vector<32x32xf32>
    %149 = tpu.matmul %147, %148, %cst_94 {dimension_numbers = #tpu.dot_dimension_numbers<[1], [0], [0], [1], [0, 0, 1, 1], [], []>} : vector<32x32xbf16>, vector<32x32xbf16>, vector<32x32xf32> -> vector<32x32xf32>
    %150 = vector.broadcast %145 : vector<32x1xf32> to vector<32x32xf32>
    %151 = arith.mulf %150, %140 : vector<32x32xf32>
    %152 = arith.addf %151, %149 : vector<32x32xf32>
    %153 = vector.broadcast %143 : vector<1x32xf32> to vector<32x32xf32>
    %154 = arith.addf %152, %153 : vector<32x32xf32>
    %cst_95 = arith.constant 0.000000e+00 : f32
    %155 = vector.broadcast %cst_95 : f32 to vector<32x32xf32>
    %156 = arith.maximumf %154, %155 : vector<32x32xf32>
    %157 = arith.addf %114, %156 : vector<32x32xf32>
    %c6_96 = arith.constant 6 : index
    %c0_97 = arith.constant 0 : index
    %c0_98 = arith.constant 0 : index
    %158 = vector.load %arg4[%c6_96, %c0_97, %c0_98] : memref<8x32x64xbf16, #tpu.memory_space<vmem>>, vector<1x32x64xbf16>
    %159 = vector.shape_cast %158 : vector<1x32x64xbf16> to vector<32x64xbf16>
    %160 = arith.truncf %157 : vector<32x32xf32> to vector<32x32xbf16>
    %cst_99 = arith.constant dense<0.000000e+00> : vector<32x64xf32>
    %161 = tpu.matmul %160, %159, %cst_99 {dimension_numbers = #tpu.dot_dimension_numbers<[1], [0], [0], [1], [0, 0, 1, 1], [], []>} : vector<32x32xbf16>, vector<32x64xbf16>, vector<32x64xf32> -> vector<32x64xf32>
    %162 = vector.extract_strided_slice %161 {offsets = [0, 0], sizes = [32, 32], strides = [1, 1]} : vector<32x64xf32> to vector<32x32xf32>
    %163 = vector.extract_strided_slice %161 {offsets = [0, 32], sizes = [32, 32], strides = [1, 1]} : vector<32x64xf32> to vector<32x32xf32>
    %c6_100 = arith.constant 6 : index
    %c0_101 = arith.constant 0 : index
    %c0_102 = arith.constant 0 : index
    %164 = vector.load %arg5[%c6_100, %c0_101, %c0_102] : memref<8x1x32xf32, #tpu.memory_space<vmem>>, vector<1x1x32xf32>
    %165 = vector.shape_cast %164 : vector<1x1x32xf32> to vector<1x32xf32>
    %c7 = arith.constant 7 : index
    %c0_103 = arith.constant 0 : index
    %c0_104 = arith.constant 0 : index
    %166 = vector.load %arg9[%c7, %c0_103, %c0_104] : memref<10x32x1xf32, #tpu.memory_space<vmem>>, vector<1x32x1xf32>
    %167 = vector.shape_cast %166 : vector<1x32x1xf32> to vector<32x1xf32>
    %c7_105 = arith.constant 7 : index
    %c0_106 = arith.constant 0 : index
    %c0_107 = arith.constant 0 : index
    %168 = vector.load %arg8[%c7_105, %c0_106, %c0_107] : memref<10x32x32xbf16, #tpu.memory_space<vmem>>, vector<1x32x32xbf16>
    %169 = vector.shape_cast %168 : vector<1x32x32xbf16> to vector<32x32xbf16>
    %170 = arith.truncf %163 : vector<32x32xf32> to vector<32x32xbf16>
    %cst_108 = arith.constant dense<0.000000e+00> : vector<32x32xf32>
    %171 = tpu.matmul %169, %170, %cst_108 {dimension_numbers = #tpu.dot_dimension_numbers<[1], [0], [0], [1], [0, 0, 1, 1], [], []>} : vector<32x32xbf16>, vector<32x32xbf16>, vector<32x32xf32> -> vector<32x32xf32>
    %172 = vector.broadcast %167 : vector<32x1xf32> to vector<32x32xf32>
    %173 = arith.mulf %172, %162 : vector<32x32xf32>
    %174 = arith.addf %173, %171 : vector<32x32xf32>
    %175 = vector.broadcast %165 : vector<1x32xf32> to vector<32x32xf32>
    %176 = arith.addf %174, %175 : vector<32x32xf32>
    %cst_109 = arith.constant 0.000000e+00 : f32
    %177 = vector.broadcast %cst_109 : f32 to vector<32x32xf32>
    %178 = arith.maximumf %176, %177 : vector<32x32xf32>
    %c7_110 = arith.constant 7 : index
    %c0_111 = arith.constant 0 : index
    %c0_112 = arith.constant 0 : index
    %179 = vector.load %arg4[%c7_110, %c0_111, %c0_112] : memref<8x32x64xbf16, #tpu.memory_space<vmem>>, vector<1x32x64xbf16>
    %180 = vector.shape_cast %179 : vector<1x32x64xbf16> to vector<32x64xbf16>
    %181 = arith.truncf %178 : vector<32x32xf32> to vector<32x32xbf16>
    %cst_113 = arith.constant dense<0.000000e+00> : vector<32x64xf32>
    %182 = tpu.matmul %181, %180, %cst_113 {dimension_numbers = #tpu.dot_dimension_numbers<[1], [0], [0], [1], [0, 0, 1, 1], [], []>} : vector<32x32xbf16>, vector<32x64xbf16>, vector<32x64xf32> -> vector<32x64xf32>
    %183 = vector.extract_strided_slice %182 {offsets = [0, 0], sizes = [32, 32], strides = [1, 1]} : vector<32x64xf32> to vector<32x32xf32>
    %184 = vector.extract_strided_slice %182 {offsets = [0, 32], sizes = [32, 32], strides = [1, 1]} : vector<32x64xf32> to vector<32x32xf32>
    %c7_114 = arith.constant 7 : index
    %c0_115 = arith.constant 0 : index
    %c0_116 = arith.constant 0 : index
    %185 = vector.load %arg5[%c7_114, %c0_115, %c0_116] : memref<8x1x32xf32, #tpu.memory_space<vmem>>, vector<1x1x32xf32>
    %186 = vector.shape_cast %185 : vector<1x1x32xf32> to vector<1x32xf32>
    %c8 = arith.constant 8 : index
    %c0_117 = arith.constant 0 : index
    %c0_118 = arith.constant 0 : index
    %187 = vector.load %arg9[%c8, %c0_117, %c0_118] : memref<10x32x1xf32, #tpu.memory_space<vmem>>, vector<1x32x1xf32>
    %188 = vector.shape_cast %187 : vector<1x32x1xf32> to vector<32x1xf32>
    %c8_119 = arith.constant 8 : index
    %c0_120 = arith.constant 0 : index
    %c0_121 = arith.constant 0 : index
    %189 = vector.load %arg8[%c8_119, %c0_120, %c0_121] : memref<10x32x32xbf16, #tpu.memory_space<vmem>>, vector<1x32x32xbf16>
    %190 = vector.shape_cast %189 : vector<1x32x32xbf16> to vector<32x32xbf16>
    %191 = arith.truncf %184 : vector<32x32xf32> to vector<32x32xbf16>
    %cst_122 = arith.constant dense<0.000000e+00> : vector<32x32xf32>
    %192 = tpu.matmul %190, %191, %cst_122 {dimension_numbers = #tpu.dot_dimension_numbers<[1], [0], [0], [1], [0, 0, 1, 1], [], []>} : vector<32x32xbf16>, vector<32x32xbf16>, vector<32x32xf32> -> vector<32x32xf32>
    %193 = vector.broadcast %188 : vector<32x1xf32> to vector<32x32xf32>
    %194 = arith.mulf %193, %183 : vector<32x32xf32>
    %195 = arith.addf %194, %192 : vector<32x32xf32>
    %196 = vector.broadcast %186 : vector<1x32xf32> to vector<32x32xf32>
    %197 = arith.addf %195, %196 : vector<32x32xf32>
    %cst_123 = arith.constant 0.000000e+00 : f32
    %198 = vector.broadcast %cst_123 : f32 to vector<32x32xf32>
    %199 = arith.maximumf %197, %198 : vector<32x32xf32>
    %200 = arith.addf %157, %199 : vector<32x32xf32>
    %201 = arith.truncf %200 : vector<32x32xf32> to vector<32x32xbf16>
    %c0_124 = arith.constant 0 : index
    %c0_125 = arith.constant 0 : index
    %202 = vector.load %arg6[%c0_124, %c0_125] : memref<32x256xbf16, #tpu.memory_space<vmem>>, vector<32x256xbf16>
    %cst_126 = arith.constant dense<0.000000e+00> : vector<32x256xf32>
    %203 = tpu.matmul %201, %202, %cst_126 {dimension_numbers = #tpu.dot_dimension_numbers<[1], [0], [0], [1], [0, 0, 1, 1], [], []>} : vector<32x32xbf16>, vector<32x256xbf16>, vector<32x256xf32> -> vector<32x256xf32>
    %204 = vector.extract_strided_slice %203 {offsets = [0, 0], sizes = [32, 128], strides = [1, 1]} : vector<32x256xf32> to vector<32x128xf32>
    %205 = vector.extract_strided_slice %203 {offsets = [0, 128], sizes = [32, 128], strides = [1, 1]} : vector<32x256xf32> to vector<32x128xf32>
    %c0_127 = arith.constant 0 : index
    %c0_128 = arith.constant 0 : index
    %206 = vector.load %arg7[%c0_127, %c0_128] : memref<1x128xf32, #tpu.memory_space<vmem>>, vector<1x128xf32>
    %c9 = arith.constant 9 : index
    %c0_129 = arith.constant 0 : index
    %c0_130 = arith.constant 0 : index
    %207 = vector.load %arg9[%c9, %c0_129, %c0_130] : memref<10x32x1xf32, #tpu.memory_space<vmem>>, vector<1x32x1xf32>
    %208 = vector.shape_cast %207 : vector<1x32x1xf32> to vector<32x1xf32>
    %c9_131 = arith.constant 9 : index
    %c0_132 = arith.constant 0 : index
    %c0_133 = arith.constant 0 : index
    %209 = vector.load %arg8[%c9_131, %c0_132, %c0_133] : memref<10x32x32xbf16, #tpu.memory_space<vmem>>, vector<1x32x32xbf16>
    %210 = vector.shape_cast %209 : vector<1x32x32xbf16> to vector<32x32xbf16>
    %211 = arith.truncf %205 : vector<32x128xf32> to vector<32x128xbf16>
    %cst_134 = arith.constant dense<0.000000e+00> : vector<32x128xf32>
    %212 = tpu.matmul %210, %211, %cst_134 {dimension_numbers = #tpu.dot_dimension_numbers<[1], [0], [0], [1], [0, 0, 1, 1], [], []>} : vector<32x32xbf16>, vector<32x128xbf16>, vector<32x128xf32> -> vector<32x128xf32>
    %213 = vector.broadcast %208 : vector<32x1xf32> to vector<32x128xf32>
    %214 = arith.mulf %213, %204 : vector<32x128xf32>
    %215 = arith.addf %214, %212 : vector<32x128xf32>
    %216 = vector.broadcast %206 : vector<1x128xf32> to vector<32x128xf32>
    %217 = arith.addf %215, %216 : vector<32x128xf32>
    %c0_135 = arith.constant 0 : index
    %c0_136 = arith.constant 0 : index
    %218 = vector.load %arg10[%c0_135, %c0_136] : memref<32x128xf32, #tpu.memory_space<vmem>>, vector<32x128xf32>
    tpu.vector_store %arg10[%c0_135, %c0_136], %217 {strides = array<i32>} : memref<32x128xf32, #tpu.memory_space<vmem>>, vector<32x128xf32>,
    return
  }
  func.func @transform_0(%arg0: i32) -> (i32, i32) {
    %c0_i32 = arith.constant 0 : i32
    %c0_i32_0 = arith.constant 0 : i32
    return %arg0, %c0_i32 : i32, i32
  }
  func.func @transform_1(%arg0: i32) -> (i32, i32) {
    %c0_i32 = arith.constant 0 : i32
    %c0_i32_0 = arith.constant 0 : i32
    %c0_i32_1 = arith.constant 0 : i32
    return %c0_i32, %c0_i32_0 : i32, i32
  }
  func.func @transform_2(%arg0: i32) -> (i32, i32) {
    %c0_i32 = arith.constant 0 : i32
    %c0_i32_0 = arith.constant 0 : i32
    %c0_i32_1 = arith.constant 0 : i32
    return %c0_i32, %c0_i32_0 : i32, i32
  }
  func.func @transform_3(%arg0: i32) -> (i32, i32, i32) {
    %c0_i32 = arith.constant 0 : i32
    %c0_i32_0 = arith.constant 0 : i32
    %c0_i32_1 = arith.constant 0 : i32
    %c0_i32_2 = arith.constant 0 : i32
    return %c0_i32, %c0_i32_0, %c0_i32_1 : i32, i32, i32
  }
  func.func @transform_4(%arg0: i32) -> (i32, i32, i32) {
    %c0_i32 = arith.constant 0 : i32
    %c0_i32_0 = arith.constant 0 : i32
    %c0_i32_1 = arith.constant 0 : i32
    %c0_i32_2 = arith.constant 0 : i32
    return %c0_i32, %c0_i32_0, %c0_i32_1 : i32, i32, i32
  }
  func.func @transform_5(%arg0: i32) -> (i32, i32) {
    %c0_i32 = arith.constant 0 : i32
    %c0_i32_0 = arith.constant 0 : i32
    %c0_i32_1 = arith.constant 0 : i32
    return %c0_i32, %c0_i32_0 : i32, i32
  }
  func.func @transform_6(%arg0: i32) -> (i32, i32) {
    %c0_i32 = arith.constant 0 : i32
    %c0_i32_0 = arith.constant 0 : i32
    %c0_i32_1 = arith.constant 0 : i32
    return %c0_i32, %c0_i32_0 : i32, i32
  }
  func.func @transform_7(%arg0: i32) -> (i32, i32, i32) {
    %c0_i32 = arith.constant 0 : i32
    %c0_i32_0 = arith.constant 0 : i32
    %c0_i32_1 = arith.constant 0 : i32
    %c0_i32_2 = arith.constant 0 : i32
    return %c0_i32, %c0_i32_0, %c0_i32_1 : i32, i32, i32
  }
  func.func @transform_8(%arg0: i32) -> (i32, i32, i32) {
    %c0_i32 = arith.constant 0 : i32
    %c0_i32_0 = arith.constant 0 : i32
    %c0_i32_1 = arith.constant 0 : i32
    %c0_i32_2 = arith.constant 0 : i32
    return %c0_i32, %c0_i32_0, %c0_i32_1 : i32, i32, i32
  }
  func.func @transform_9(%arg0: i32) -> (i32, i32) {
    %c0_i32 = arith.constant 0 : i32
    %c0_i32_0 = arith.constant 0 : i32
    return %arg0, %c0_i32 : i32, i32
  }
}

</mosaic_0001>

<llo_original>
// kernel: tpu_custom_call.1
$region0: #{tpu_custom_call.1}
  #allocation0 [shape = 'u32[]', space=smem, size = 0x4, offset = 0x4, fixed_abs, tag = 'smem constant byte address 0x4 - core index']
  #allocation1 [shape = 'u32[144,128]{1,0:T(1,128)}', space=vmem, size = 0x12000, scoped, tag = 'internal scratch']
  %s0 = inlined_call_operand.vmem [shape: f32[32,2], index: 0, kind: input, shape index: {}]
  %s1 = inlined_call_operand.vmem [shape: f32[2,64], index: 1, kind: input, shape index: {}]
  %s2 = inlined_call_operand.vmem [shape: f32[1,32], index: 2, kind: input, shape index: {}]
  %s3 = inlined_call_operand.vmem [shape: bf16[8,32,64], index: 3, kind: input, shape index: {}]
  %s4 = inlined_call_operand.vmem [shape: f32[8,1,32], index: 4, kind: input, shape index: {}]
  %s5 = inlined_call_operand.vmem [shape: bf16[32,256], index: 5, kind: input, shape index: {}]
  %s6 = inlined_call_operand.vmem [shape: f32[1,128], index: 6, kind: input, shape index: {}]
  %s7 = inlined_call_operand.vmem [shape: bf16[10,32,32], index: 7, kind: input, shape index: {}]
  %s8 = inlined_call_operand.vmem [shape: f32[10,32,1], index: 8, kind: input, shape index: {}]
  %s9 = inlined_call_operand.hbm [shape: f32[32,128], index: 9, kind: output, shape index: {}]
  %s10 = sld [smem:[#allocation0]]
  $region46: #{tpu_custom_call.1} parent=0
    _
  %s12 = ssub.s32 1, %s10
  %s13 = scalar_select 0, %s12, %s10
  $region1: #{tpu_custom_call.1} parent=0
    #allocation2 [shape = 'u8[16384]{0}', space=vmem, size = 0x4000, scoped, tag = 'output window, operand 0, single buffered']
    #allocation3 [shape = 's32[1]{0}', space=sflag, size = 0x4, scoped, tag = 'scoped memory for tpu_custom_call.1']
    %14 = vsyncpa [#allocation3], 0
    // Predicated region
    $region2: #{tpu_custom_call.1} parent=1 // pred_check
      _
    $region3: #{tpu_custom_call.1} parent=1 // pred_check_branch
      %16 = sbr.rel (0) target = $region5
    $region4: #{tpu_custom_call.1} parent=1 // pred_region
      _
    $region5: #{tpu_custom_call.1} parent=1 // pred_fallthru
      _
    // Predicated region
    $region6: #{tpu_custom_call.1} parent=1 // pred_check
      _
    $region7: #{tpu_custom_call.1} parent=1 // pred_check_branch
      %18 = sbr.rel (0) target = $region9
    $region8: #{tpu_custom_call.1} parent=1 // pred_region
      _
    $region9: #{tpu_custom_call.1} parent=1 // pred_fallthru
      _
    // Predicated region
    $region10: #{tpu_custom_call.1} parent=1 // pred_check
      _
    $region11: #{tpu_custom_call.1} parent=1 // pred_check_branch
      %20 = sbr.rel (0) target = $region13
    $region12: #{tpu_custom_call.1} parent=1 // pred_region
      _
    $region13: #{tpu_custom_call.1} parent=1 // pred_fallthru
      _
    // Predicated region
    $region14: #{tpu_custom_call.1} parent=1 // pred_check
      _
    $region15: #{tpu_custom_call.1} parent=1 // pred_check_branch
      %22 = sbr.rel (0) target = $region17
    $region16: #{tpu_custom_call.1} parent=1 // pred_region
      _
    $region17: #{tpu_custom_call.1} parent=1 // pred_fallthru
      _
    // Predicated region
    $region18: #{tpu_custom_call.1} parent=1 // pred_check
      _
    $region19: #{tpu_custom_call.1} parent=1 // pred_check_branch
      %24 = sbr.rel (0) target = $region21
    $region20: #{tpu_custom_call.1} parent=1 // pred_region
      _
    $region21: #{tpu_custom_call.1} parent=1 // pred_fallthru
      _
    // Predicated region
    $region22: #{tpu_custom_call.1} parent=1 // pred_check
      _
    $region23: #{tpu_custom_call.1} parent=1 // pred_check_branch
      %26 = sbr.rel (0) target = $region25
    $region24: #{tpu_custom_call.1} parent=1 // pred_region
      _
    $region25: #{tpu_custom_call.1} parent=1 // pred_fallthru
      _
    // Predicated region
    $region26: #{tpu_custom_call.1} parent=1 // pred_check
      _
    $region27: #{tpu_custom_call.1} parent=1 // pred_check_branch
      %28 = sbr.rel (0) target = $region29
    $region28: #{tpu_custom_call.1} parent=1 // pred_region
      _
    $region29: #{tpu_custom_call.1} parent=1 // pred_fallthru
      _
    // Predicated region
    $region30: #{tpu_custom_call.1} parent=1 // pred_check
      _
    $region31: #{tpu_custom_call.1} parent=1 // pred_check_branch
      %30 = sbr.rel (0) target = $region33
    $region32: #{tpu_custom_call.1} parent=1 // pred_region
      _
    $region33: #{tpu_custom_call.1} parent=1 // pred_fallthru
      _
    // Predicated region
    $region34: #{tpu_custom_call.1} parent=1 // pred_check
      _
    $region35: #{tpu_custom_call.1} parent=1 // pred_check_branch
      %32 = sbr.rel (0) target = $region37
    $region36: #{tpu_custom_call.1} parent=1 // pred_region
      _
    $region37: #{tpu_custom_call.1} parent=1 // pred_fallthru
      _
    %v34 = vld [vmem:[%s0] sm:$0xff]
    %v35 = vld [vmem:[%s0 + $0x8] sm:$0xff]
    %v36 = vld [vmem:[%s0 + $0x10] sm:$0xff]
    %v37 = vld [vmem:[%s0 + $0x18] sm:$0xff]
    %v38 = vld [vmem:[%s1] sm:$0x3]
    %40 = vset.pattern.permute.xlu0 0
    %41 = vperm.xlu0 %40, %v34
    %v42 = vpop.permute.xlu0 %41
    %45 = vset.pattern.permute.xlu0 0
    %46 = vperm.xlu0 %45, %v35
    %v47 = vpop.permute.xlu0 %46
    %50 = vset.pattern.permute.xlu0 0
    %51 = vperm.xlu0 %50, %v36
    %v52 = vpop.permute.xlu0 %51
    %55 = vset.pattern.permute.xlu0 0
    %56 = vperm.xlu0 %55, %v37
    %v57 = vpop.permute.xlu0 %56
    %v59 = vlaneseq
    %v60 = vshrl.u32 %v59, 7
    %v61 = vsub.s32 0, %v60
    %v62 = vrot.slane %v38, %v61
    %v63 = vmul.f32 %v42, %v62
    %v64 = vmul.f32 %v47, %v62
    %v65 = vmul.f32 %v52, %v62
    %v66 = vmul.f32 %v57, %v62
    %67 = vset.pattern.permute.xlu0 1
    %68 = vperm.xlu0 %67, %v34
    %v69 = vpop.permute.xlu0 %68
    %71 = vset.pattern.permute.xlu0 1
    %72 = vperm.xlu0 %71, %v35
    %v73 = vpop.permute.xlu0 %72
    %75 = vset.pattern.permute.xlu0 1
    %76 = vperm.xlu0 %75, %v36
    %v77 = vpop.permute.xlu0 %76
    %79 = vset.pattern.permute.xlu0 1
    %80 = vperm.xlu0 %79, %v37
    %v81 = vpop.permute.xlu0 %80
    %v83 = vlaneseq
    %v84 = vshrl.u32 %v83, 7
    %v85 = vsub.s32 1, %v84
    %v86 = vrot.slane %v38, %v85
    %v87 = vmul.f32 %v69, %v86
    %v88 = vmul.f32 %v73, %v86
    %v89 = vmul.f32 %v77, %v86
    %v90 = vmul.f32 %v81, %v86
    %v91 = vadd.f32 %v63, %v87
    %v92 = vadd.f32 %v64, %v88
    %v93 = vadd.f32 %v65, %v89
    %v94 = vadd.f32 %v66, %v90
    %v95 = vld [vmem:[%s2] sm:$0x1]
    %v96 = vld [vmem:[%s8] sm:$0xff]
    %v97 = vld [vmem:[%s8 + $0x8] sm:$0xff]
    %v98 = vld [vmem:[%s8 + $0x10] sm:$0xff]
    %v99 = vld [vmem:[%s8 + $0x18] sm:$0xff]
    %v100 = vld [vmem:[%s7] sm:$0xf]
    %v101 = vld [vmem:[%s7 + $0x4] sm:$0xf]
    %v102 = vld [vmem:[%s7 + $0x8] sm:$0xf]
    %v103 = vld [vmem:[%s7 + $0xc] sm:$0xf]
    %v104 = vpack.c.bf16 %v92, %v91
    %v105 = vpack.c.bf16 %v94, %v93
    %v110 = vunpack.c.l.b16 %v100
    %v111 = vunpack.c.l.b16 %v101
    %v112 = vunpack.c.l.b16 %v102
    %v113 = vunpack.c.l.b16 %v103
    %v114 = vpack.c.b16 %v111, %v110
    %v115 = vpack.c.b16 %v113, %v112
    %118 = vrot.lane.b32.xlu0 %v104, 96
    %v119 = vpop.permute.xlu0 %118
    %120 = vrot.lane.b32.xlu0 %v105, 96
    %v121 = vpop.permute.xlu0 %120
    %vm124 = vcmask 261120
    %v126 = vsel %vm124, %v114, 0
    %v129 = vsel %vm124, %v115, 0
    %131 = vmatprep.subr.bf16.mxu0 0
    %132 = vmatpush1.bf16.msra.mxu0 0
    %133 = vmatprep.subr.bf16.mxu0 0
    %134 = vmatpush1.bf16.msra.mxu0 0
    %135 = vmatprep.subr.bf16.mxu0 0
    %136 = vmatpush1.bf16.msra.mxu0 0
    %137 = vmatprep.subr.bf16.mxu0 0
    %138 = vmatpush1.bf16.msra.mxu0 0
    %139 = vmatprep.subr.bf16.mxu0 0
    %140 = vmatpush1.bf16.msra.mxu0 0
    %141 = vmatprep.subr.bf16.mxu0 0
    %142 = vmatpush1.bf16.msra.mxu0 0
    %143 = vmatprep.subr.bf16.mxu0 0
    %144 = vmatpush1.bf16.msra.mxu0 %v121
    %145 = vmatprep.subr.bf16.mxu0 0
    %146 = vmatpush1.bf16.msra.mxu0 %v119
    %147 = vmatprep.subr.bf16.mxu0 0
    %148 = vmatpush2.bf16.msra.mxu0 0
    %149 = vmatprep.subr.bf16.mxu0 0
    %150 = vmatpush2.bf16.msra.mxu0 0
    %151 = vmatprep.subr.bf16.mxu0 0
    %152 = vmatpush2.bf16.msra.mxu0 0
    %153 = vmatprep.subr.bf16.mxu0 0
    %154 = vmatpush2.bf16.msra.mxu0 0
    %155 = vmatprep.subr.bf16.mxu0 0
    %156 = vmatpush2.bf16.msra.mxu0 0
    %157 = vmatprep.subr.bf16.mxu0 0
    %158 = vmatpush2.bf16.msra.mxu0 0
    %159 = vmatprep.subr.bf16.mxu0 0
    %160 = vmatpush2.bf16.msra.mxu0 0
    %161 = vmatprep.subr.bf16.mxu0 0
    %162 = vmatpush2.bf16.msra.mxu0 0
    %163 = vmatprep.mubr.bf16.mxu0 0
    %164 = vmatmul.mubr.bf16.gmra.mxu0 %v126
    %v165 = vpop.f32.mrf.mxu0
    %v166 = vadd.f32 0.0, %v165
    %v167 = vpop.f32.mrf.mxu0
    %v168 = vpop.f32.mrf.mxu0
    %v169 = vadd.f32 0.0, %v168
    %v170 = vpop.f32.mrf.mxu0
    %171 = vmatprep.mubr.bf16.mxu0 0
    %172 = vmatmul.mubr.bf16.gmra.mxu0 %v129
    %v173 = vpop.f32.mrf.mxu0
    %v174 = vadd.f32 0.0, %v173
    %v175 = vpop.f32.mrf.mxu0
    %v176 = vpop.f32.mrf.mxu0
    %v177 = vadd.f32 0.0, %v176
    %v178 = vpop.f32.mrf.mxu0
    %179 = vdwg.mxu0
    %181 = vset.pattern.permute.xlu0 0
    %182 = vperm.xlu0 %181, %v96
    %v183 = vpop.permute.xlu0 %182
    %186 = vset.pattern.permute.xlu0 0
    %187 = vperm.xlu0 %186, %v97
    %v188 = vpop.permute.xlu0 %187
    %191 = vset.pattern.permute.xlu0 0
    %192 = vperm.xlu0 %191, %v98
    %v193 = vpop.permute.xlu0 %192
    %196 = vset.pattern.permute.xlu0 0
    %197 = vperm.xlu0 %196, %v99
    %v198 = vpop.permute.xlu0 %197
    %v200 = vmul.f32 %v183, %v91
    %v201 = vmul.f32 %v188, %v92
    %v202 = vmul.f32 %v193, %v93
    %v203 = vmul.f32 %v198, %v94
    %v204 = vadd.f32 %v200, %v166
    %v205 = vadd.f32 %v201, %v169
    %v206 = vadd.f32 %v202, %v174
    %v207 = vadd.f32 %v203, %v177
    %v209 = vlaneseq
    %v210 = vshrl.u32 %v209, 7
    %v211 = vsub.s32 0, %v210
    %v212 = vrot.slane %v95, %v211
    %v214 = vadd.f32 %v204, %v212
    %v215 = vadd.f32 %v205, %v212
    %v216 = vadd.f32 %v206, %v212
    %v217 = vadd.f32 %v207, %v212
    %v218 = vmax.f32 %v214, 0.0
    %v219 = vmax.f32 %v215, 0.0
    %v220 = vmax.f32 %v216, 0.0
    %v221 = vmax.f32 %v217, 0.0
    %v222 = vld [vmem:[%s3] sm:$0xf]
    %v223 = vld [vmem:[%s3 + $0x4] sm:$0xf]
    %v224 = vld [vmem:[%s3 + $0x8] sm:$0xf]
    %v225 = vld [vmem:[%s3 + $0xc] sm:$0xf]
    %v226 = vpack.c.bf16 %v219, %v218
    %v227 = vpack.c.bf16 %v221, %v220
    %v232 = vunpack.c.l.b16 %v222
    %v233 = vunpack.c.l.b16 %v223
    %v234 = vunpack.c.l.b16 %v224
    %v235 = vunpack.c.l.b16 %v225
    %v236 = vpack.c.b16 %v233, %v232
    %v237 = vpack.c.b16 %v235, %v234
    %v241 = vsel %vm124, %v226, 0
    %v244 = vsel %vm124, %v227, 0
    %246 = vmatprep.subr.bf16.mxu0 0
    %247 = vmatpush1.bf16.msra.mxu0 0
    %248 = vmatprep.subr.bf16.mxu0 0
    %249 = vmatpush1.bf16.msra.mxu0 0
    %250 = vmatprep.subr.bf16.mxu0 0
    %251 = vmatpush1.bf16.msra.mxu0 0
    %252 = vmatprep.subr.bf16.mxu0 0
    %253 = vmatpush1.bf16.msra.mxu0 0
    %254 = vmatprep.subr.bf16.mxu0 0
    %255 = vmatpush1.bf16.msra.mxu0 0
    %256 = vmatprep.subr.bf16.mxu0 0
    %257 = vmatpush1.bf16.msra.mxu0 0
    %258 = vmatprep.subr.bf16.mxu0 0
    %259 = vmatpush1.bf16.msra.mxu0 %v237
    %260 = vmatprep.subr.bf16.mxu0 0
    %261 = vmatpush1.bf16.msra.mxu0 %v236
    %262 = vmatprep.subr.bf16.mxu0 0
    %263 = vmatpush2.bf16.msra.mxu0 0
    %264 = vmatprep.subr.bf16.mxu0 0
    %265 = vmatpush2.bf16.msra.mxu0 0
    %266 = vmatprep.subr.bf16.mxu0 0
    %267 = vmatpush2.bf16.msra.mxu0 0
    %268 = vmatprep.subr.bf16.mxu0 0
    %269 = vmatpush2.bf16.msra.mxu0 0
    %270 = vmatprep.subr.bf16.mxu0 0
    %271 = vmatpush2.bf16.msra.mxu0 0
    %272 = vmatprep.subr.bf16.mxu0 0
    %273 = vmatpush2.bf16.msra.mxu0 0
    %274 = vmatprep.subr.bf16.mxu0 0
    %275 = vmatpush2.bf16.msra.mxu0 0
    %276 = vmatprep.subr.bf16.mxu0 0
    %277 = vmatpush2.bf16.msra.mxu0 0
    %278 = vmatprep.mubr.bf16.mxu0 0
    %279 = vmatmul.mubr.bf16.gmra.mxu0 %v241
    %v280 = vpop.f32.mrf.mxu0
    %v281 = vadd.f32 0.0, %v280
    %v282 = vpop.f32.mrf.mxu0
    %v283 = vpop.f32.mrf.mxu0
    %v284 = vadd.f32 0.0, %v283
    %v285 = vpop.f32.mrf.mxu0
    %286 = vmatprep.mubr.bf16.mxu0 0
    %287 = vmatmul.mubr.bf16.gmra.mxu0 %v244
    %v288 = vpop.f32.mrf.mxu0
    %v289 = vadd.f32 0.0, %v288
    %v290 = vpop.f32.mrf.mxu0
    %v291 = vpop.f32.mrf.mxu0
    %v292 = vadd.f32 0.0, %v291
    %v293 = vpop.f32.mrf.mxu0
    %294 = vdwg.mxu0
    %v295 = vld [vmem:[%s4] sm:$0x1]
    %s296 = scalar_lea.vmem %s8, 32
    %v297 = vld [vmem:[%s296] sm:$0xff]
    %v298 = vld [vmem:[%s296 + $0x8] sm:$0xff]
    %v299 = vld [vmem:[%s296 + $0x10] sm:$0xff]
    %v300 = vld [vmem:[%s296 + $0x18] sm:$0xff]
    %s301 = scalar_lea.vmem %s7, 16
    %v302 = vld [vmem:[%s301] sm:$0xf]
    %v303 = vld [vmem:[%s301 + $0x4] sm:$0xf]
    %v304 = vld [vmem:[%s301 + $0x8] sm:$0xf]
    %v305 = vld [vmem:[%s301 + $0xc] sm:$0xf]
    %v306 = vpack.c.bf16 %v284, %v281
    %v307 = vpack.c.bf16 %v292, %v289
    %v312 = vunpack.c.l.b16 %v302
    %v313 = vunpack.c.l.b16 %v303
    %v314 = vunpack.c.l.b16 %v304
    %v315 = vunpack.c.l.b16 %v305
    %v316 = vpack.c.b16 %v313, %v312
    %v317 = vpack.c.b16 %v315, %v314
    %320 = vrot.lane.b32.xlu0 %v306, 96
    %v321 = vpop.permute.xlu0 %320
    %322 = vrot.lane.b32.xlu0 %v307, 96
    %v323 = vpop.permute.xlu0 %322
    %v327 = vsel %vm124, %v316, 0
    %v330 = vsel %vm124, %v317, 0
    %332 = vmatprep.subr.bf16.mxu0 0
    %333 = vmatpush1.bf16.msra.mxu0 0
    %334 = vmatprep.subr.bf16.mxu0 0
    %335 = vmatpush1.bf16.msra.mxu0 0
    %336 = vmatprep.subr.bf16.mxu0 0
    %337 = vmatpush1.bf16.msra.mxu0 0
    %338 = vmatprep.subr.bf16.mxu0 0
    %339 = vmatpush1.bf16.msra.mxu0 0
    %340 = vmatprep.subr.bf16.mxu0 0
    %341 = vmatpush1.bf16.msra.mxu0 0
    %342 = vmatprep.subr.bf16.mxu0 0
    %343 = vmatpush1.bf16.msra.mxu0 0
    %344 = vmatprep.subr.bf16.mxu0 0
    %345 = vmatpush1.bf16.msra.mxu0 %v323
    %346 = vmatprep.subr.bf16.mxu0 0
    %347 = vmatpush1.bf16.msra.mxu0 %v321
    %348 = vmatprep.subr.bf16.mxu0 0
    %349 = vmatpush2.bf16.msra.mxu0 0
    %350 = vmatprep.subr.bf16.mxu0 0
    %351 = vmatpush2.bf16.msra.mxu0 0
    %352 = vmatprep.subr.bf16.mxu0 0
    %353 = vmatpush2.bf16.msra.mxu0 0
    %354 = vmatprep.subr.bf16.mxu0 0
    %355 = vmatpush2.bf16.msra.mxu0 0
    %356 = vmatprep.subr.bf16.mxu0 0
    %357 = vmatpush2.bf16.msra.mxu0 0
    %358 = vmatprep.subr.bf16.mxu0 0
    %359 = vmatpush2.bf16.msra.mxu0 0
    %360 = vmatprep.subr.bf16.mxu0 0
    %361 = vmatpush2.bf16.msra.mxu0 0
    %362 = vmatprep.subr.bf16.mxu0 0
    %363 = vmatpush2.bf16.msra.mxu0 0
    %364 = vmatprep.mubr.bf16.mxu0 0
    %365 = vmatmul.mubr.bf16.gmra.mxu0 %v327
    %v366 = vpop.f32.mrf.mxu0
    %v367 = vadd.f32 0.0, %v366
    %v368 = vpop.f32.mrf.mxu0
    %v369 = vpop.f32.mrf.mxu0
    %v370 = vadd.f32 0.0, %v369
    %v371 = vpop.f32.mrf.mxu0
    %372 = vmatprep.mubr.bf16.mxu0 0
    %373 = vmatmul.mubr.bf16.gmra.mxu0 %v330
    %v374 = vpop.f32.mrf.mxu0
    %v375 = vadd.f32 0.0, %v374
    %v376 = vpop.f32.mrf.mxu0
    %v377 = vpop.f32.mrf.mxu0
    %v378 = vadd.f32 0.0, %v377
    %v379 = vpop.f32.mrf.mxu0
    %380 = vdwg.mxu0
    %382 = vset.pattern.permute.xlu0 0
    %383 = vperm.xlu0 %382, %v297
    %v384 = vpop.permute.xlu0 %383
    %387 = vset.pattern.permute.xlu0 0
    %388 = vperm.xlu0 %387, %v298
    %v389 = vpop.permute.xlu0 %388
    %392 = vset.pattern.permute.xlu0 0
    %393 = vperm.xlu0 %392, %v299
    %v394 = vpop.permute.xlu0 %393
    %397 = vset.pattern.permute.xlu0 0
    %398 = vperm.xlu0 %397, %v300
    %v399 = vpop.permute.xlu0 %398
    %v401 = vmul.f32 %v384, %v281
    %v402 = vmul.f32 %v389, %v284
    %v403 = vmul.f32 %v394, %v289
    %v404 = vmul.f32 %v399, %v292
    %v405 = vadd.f32 %v401, %v367
    %v406 = vadd.f32 %v402, %v370
    %v407 = vadd.f32 %v403, %v375
    %v408 = vadd.f32 %v404, %v378
    %v410 = vlaneseq
    %v411 = vshrl.u32 %v410, 7
    %v412 = vsub.s32 0, %v411
    %v413 = vrot.slane %v295, %v412
    %v415 = vadd.f32 %v405, %v413
    %v416 = vadd.f32 %v406, %v413
    %v417 = vadd.f32 %v407, %v413
    %v418 = vadd.f32 %v408, %v413
    %v419 = vmax.f32 %v415, 0.0
    %v420 = vmax.f32 %v416, 0.0
    %v421 = vmax.f32 %v417, 0.0
    %v422 = vmax.f32 %v418, 0.0
    %s423 = scalar_lea.vmem %s3, 16
    %v424 = vld [vmem:[%s423] sm:$0xf]
    %v425 = vld [vmem:[%s423 + $0x4] sm:$0xf]
    %v426 = vld [vmem:[%s423 + $0x8] sm:$0xf]
    %v427 = vld [vmem:[%s423 + $0xc] sm:$0xf]
    %v428 = vpack.c.bf16 %v420, %v419
    %v429 = vpack.c.bf16 %v422, %v421
    %v434 = vunpack.c.l.b16 %v424
    %v435 = vunpack.c.l.b16 %v425
    %v436 = vunpack.c.l.b16 %v426
    %v437 = vunpack.c.l.b16 %v427
    %v438 = vpack.c.b16 %v435, %v434
    %v439 = vpack.c.b16 %v437, %v436
    %v443 = vsel %vm124, %v428, 0
    %v446 = vsel %vm124, %v429, 0
    %448 = vmatprep.subr.bf16.mxu0 0
    %449 = vmatpush1.bf16.msra.mxu0 0
    %450 = vmatprep.subr.bf16.mxu0 0
    %451 = vmatpush1.bf16.msra.mxu0 0
    %452 = vmatprep.subr.bf16.mxu0 0
    %453 = vmatpush1.bf16.msra.mxu0 0
    %454 = vmatprep.subr.bf16.mxu0 0
    %455 = vmatpush1.bf16.msra.mxu0 0
    %456 = vmatprep.subr.bf16.mxu0 0
    %457 = vmatpush1.bf16.msra.mxu0 0
    %458 = vmatprep.subr.bf16.mxu0 0
    %459 = vmatpush1.bf16.msra.mxu0 0
    %460 = vmatprep.subr.bf16.mxu0 0
    %461 = vmatpush1.bf16.msra.mxu0 %v439
    %462 = vmatprep.subr.bf16.mxu0 0
    %463 = vmatpush1.bf16.msra.mxu0 %v438
    %464 = vmatprep.subr.bf16.mxu0 0
    %465 = vmatpush2.bf16.msra.mxu0 0
    %466 = vmatprep.subr.bf16.mxu0 0
    %467 = vmatpush2.bf16.msra.mxu0 0
    %468 = vmatprep.subr.bf16.mxu0 0
    %469 = vmatpush2.bf16.msra.mxu0 0
    %470 = vmatprep.subr.bf16.mxu0 0
    %471 = vmatpush2.bf16.msra.mxu0 0
    %472 = vmatprep.subr.bf16.mxu0 0
    %473 = vmatpush2.bf16.msra.mxu0 0
    %474 = vmatprep.subr.bf16.mxu0 0
    %475 = vmatpush2.bf16.msra.mxu0 0
    %476 = vmatprep.subr.bf16.mxu0 0
    %477 = vmatpush2.bf16.msra.mxu0 0
    %478 = vmatprep.subr.bf16.mxu0 0
    %479 = vmatpush2.bf16.msra.mxu0 0
    %480 = vmatprep.mubr.bf16.mxu0 0
    %481 = vmatmul.mubr.bf16.gmra.mxu0 %v443
    %v482 = vpop.f32.mrf.mxu0
    %v483 = vadd.f32 0.0, %v482
    %v484 = vpop.f32.mrf.mxu0
    %v485 = vpop.f32.mrf.mxu0
    %v486 = vadd.f32 0.0, %v485
    %v487 = vpop.f32.mrf.mxu0
    %488 = vmatprep.mubr.bf16.mxu0 0
    %489 = vmatmul.mubr.bf16.gmra.mxu0 %v446
    %v490 = vpop.f32.mrf.mxu0
    %v491 = vadd.f32 0.0, %v490
    %v492 = vpop.f32.mrf.mxu0
    %v493 = vpop.f32.mrf.mxu0
    %v494 = vadd.f32 0.0, %v493
    %v495 = vpop.f32.mrf.mxu0
    %496 = vdwg.mxu0
    %s497 = scalar_lea.vmem %s4, 1
    %v498 = vld [vmem:[%s497] sm:$0x1]
    %s499 = scalar_lea.vmem %s8, 64
    %v500 = vld [vmem:[%s499] sm:$0xff]
    %v501 = vld [vmem:[%s499 + $0x8] sm:$0xff]
    %v502 = vld [vmem:[%s499 + $0x10] sm:$0xff]
    %v503 = vld [vmem:[%s499 + $0x18] sm:$0xff]
    %s504 = scalar_lea.vmem %s7, 32
    %v505 = vld [vmem:[%s504] sm:$0xf]
    %v506 = vld [vmem:[%s504 + $0x4] sm:$0xf]
    %v507 = vld [vmem:[%s504 + $0x8] sm:$0xf]
    %v508 = vld [vmem:[%s504 + $0xc] sm:$0xf]
    %v509 = vpack.c.bf16 %v486, %v483
    %v510 = vpack.c.bf16 %v494, %v491
    %v515 = vunpack.c.l.b16 %v505
    %v516 = vunpack.c.l.b16 %v506
    %v517 = vunpack.c.l.b16 %v507
    %v518 = vunpack.c.l.b16 %v508
    %v519 = vpack.c.b16 %v516, %v515
    %v520 = vpack.c.b16 %v518, %v517
    %523 = vrot.lane.b32.xlu0 %v509, 96
    %v524 = vpop.permute.xlu0 %523
    %525 = vrot.lane.b32.xlu0 %v510, 96
    %v526 = vpop.permute.xlu0 %525
    %v530 = vsel %vm124, %v519, 0
    %v533 = vsel %vm124, %v520, 0
    %535 = vmatprep.subr.bf16.mxu0 0
    %536 = vmatpush1.bf16.msra.mxu0 0
    %537 = vmatprep.subr.bf16.mxu0 0
    %538 = vmatpush1.bf16.msra.mxu0 0
    %539 = vmatprep.subr.bf16.mxu0 0
    %540 = vmatpush1.bf16.msra.mxu0 0
    %541 = vmatprep.subr.bf16.mxu0 0
    %542 = vmatpush1.bf16.msra.mxu0 0
    %543 = vmatprep.subr.bf16.mxu0 0
    %544 = vmatpush1.bf16.msra.mxu0 0
    %545 = vmatprep.subr.bf16.mxu0 0
    %546 = vmatpush1.bf16.msra.mxu0 0
    %547 = vmatprep.subr.bf16.mxu0 0
    %548 = vmatpush1.bf16.msra.mxu0 %v526
    %549 = vmatprep.subr.bf16.mxu0 0
    %550 = vmatpush1.bf16.msra.mxu0 %v524
    %551 = vmatprep.subr.bf16.mxu0 0
    %552 = vmatpush2.bf16.msra.mxu0 0
    %553 = vmatprep.subr.bf16.mxu0 0
    %554 = vmatpush2.bf16.msra.mxu0 0
    %555 = vmatprep.subr.bf16.mxu0 0
    %556 = vmatpush2.bf16.msra.mxu0 0
    %557 = vmatprep.subr.bf16.mxu0 0
    %558 = vmatpush2.bf16.msra.mxu0 0
    %559 = vmatprep.subr.bf16.mxu0 0
    %560 = vmatpush2.bf16.msra.mxu0 0
    %561 = vmatprep.subr.bf16.mxu0 0
    %562 = vmatpush2.bf16.msra.mxu0 0
    %563 = vmatprep.subr.bf16.mxu0 0
    %564 = vmatpush2.bf16.msra.mxu0 0
    %565 = vmatprep.subr.bf16.mxu0 0
    %566 = vmatpush2.bf16.msra.mxu0 0
    %567 = vmatprep.mubr.bf16.mxu0 0
    %568 = vmatmul.mubr.bf16.gmra.mxu0 %v530
    %v569 = vpop.f32.mrf.mxu0
    %v570 = vadd.f32 0.0, %v569
    %v571 = vpop.f32.mrf.mxu0
    %v572 = vpop.f32.mrf.mxu0
    %v573 = vadd.f32 0.0, %v572
    %v574 = vpop.f32.mrf.mxu0
    %575 = vmatprep.mubr.bf16.mxu0 0
    %576 = vmatmul.mubr.bf16.gmra.mxu0 %v533
    %v577 = vpop.f32.mrf.mxu0
    %v578 = vadd.f32 0.0, %v577
    %v579 = vpop.f32.mrf.mxu0
    %v580 = vpop.f32.mrf.mxu0
    %v581 = vadd.f32 0.0, %v580
    %v582 = vpop.f32.mrf.mxu0
    %583 = vdwg.mxu0
    %585 = vset.pattern.permute.xlu0 0
    %586 = vperm.xlu0 %585, %v500
    %v587 = vpop.permute.xlu0 %586
    %590 = vset.pattern.permute.xlu0 0
    %591 = vperm.xlu0 %590, %v501
    %v592 = vpop.permute.xlu0 %591
    %595 = vset.pattern.permute.xlu0 0
    %596 = vperm.xlu0 %595, %v502
    %v597 = vpop.permute.xlu0 %596
    %600 = vset.pattern.permute.xlu0 0
    %601 = vperm.xlu0 %600, %v503
    %v602 = vpop.permute.xlu0 %601
    %v604 = vmul.f32 %v587, %v483
    %v605 = vmul.f32 %v592, %v486
    %v606 = vmul.f32 %v597, %v491
    %v607 = vmul.f32 %v602, %v494
    %v608 = vadd.f32 %v604, %v570
    %v609 = vadd.f32 %v605, %v573
    %v610 = vadd.f32 %v606, %v578
    %v611 = vadd.f32 %v607, %v581
    %v613 = vlaneseq
    %v614 = vshrl.u32 %v613, 7
    %v615 = vsub.s32 0, %v614
    %v616 = vrot.slane %v498, %v615
    %v618 = vadd.f32 %v608, %v616
    %v619 = vadd.f32 %v609, %v616
    %v620 = vadd.f32 %v610, %v616
    %v621 = vadd.f32 %v611, %v616
    %v622 = vmax.f32 %v618, 0.0
    %v623 = vmax.f32 %v619, 0.0
    %v624 = vmax.f32 %v620, 0.0
    %v625 = vmax.f32 %v621, 0.0
    %v626 = vadd.f32 %v218, %v622
    %v627 = vadd.f32 %v219, %v623
    %v628 = vadd.f32 %v220, %v624
    %v629 = vadd.f32 %v221, %v625
    %s630 = scalar_lea.vmem %s3, 32
    %v631 = vld [vmem:[%s630] sm:$0xf]
    %v632 = vld [vmem:[%s630 + $0x4] sm:$0xf]
    %v633 = vld [vmem:[%s630 + $0x8] sm:$0xf]
    %v634 = vld [vmem:[%s630 + $0xc] sm:$0xf]
    %v635 = vpack.c.bf16 %v627, %v626
    %v636 = vpack.c.bf16 %v629, %v628
    %v641 = vunpack.c.l.b16 %v631
    %v642 = vunpack.c.l.b16 %v632
    %v643 = vunpack.c.l.b16 %v633
    %v644 = vunpack.c.l.b16 %v634
    %v645 = vpack.c.b16 %v642, %v641
    %v646 = vpack.c.b16 %v644, %v643
    %v650 = vsel %vm124, %v635, 0
    %v653 = vsel %vm124, %v636, 0
    %655 = vmatprep.subr.bf16.mxu0 0
    %656 = vmatpush1.bf16.msra.mxu0 0
    %657 = vmatprep.subr.bf16.mxu0 0
    %658 = vmatpush1.bf16.msra.mxu0 0
    %659 = vmatprep.subr.bf16.mxu0 0
    %660 = vmatpush1.bf16.msra.mxu0 0
    %661 = vmatprep.subr.bf16.mxu0 0
    %662 = vmatpush1.bf16.msra.mxu0 0
    %663 = vmatprep.subr.bf16.mxu0 0
    %664 = vmatpush1.bf16.msra.mxu0 0
    %665 = vmatprep.subr.bf16.mxu0 0
    %666 = vmatpush1.bf16.msra.mxu0 0
    %667 = vmatprep.subr.bf16.mxu0 0
    %668 = vmatpush1.bf16.msra.mxu0 %v646
    %669 = vmatprep.subr.bf16.mxu0 0
    %670 = vmatpush1.bf16.msra.mxu0 %v645
    %671 = vmatprep.subr.bf16.mxu0 0
    %672 = vmatpush2.bf16.msra.mxu0 0
    %673 = vmatprep.subr.bf16.mxu0 0
    %674 = vmatpush2.bf16.msra.mxu0 0
    %675 = vmatprep.subr.bf16.mxu0 0
    %676 = vmatpush2.bf16.msra.mxu0 0
    %677 = vmatprep.subr.bf16.mxu0 0
    %678 = vmatpush2.bf16.msra.mxu0 0
    %679 = vmatprep.subr.bf16.mxu0 0
    %680 = vmatpush2.bf16.msra.mxu0 0
    %681 = vmatprep.subr.bf16.mxu0 0
    %682 = vmatpush2.bf16.msra.mxu0 0
    %683 = vmatprep.subr.bf16.mxu0 0
    %684 = vmatpush2.bf16.msra.mxu0 0
    %685 = vmatprep.subr.bf16.mxu0 0
    %686 = vmatpush2.bf16.msra.mxu0 0
    %687 = vmatprep.mubr.bf16.mxu0 0
    %688 = vmatmul.mubr.bf16.gmra.mxu0 %v650
    %v689 = vpop.f32.mrf.mxu0
    %v690 = vadd.f32 0.0, %v689
    %v691 = vpop.f32.mrf.mxu0
    %v692 = vpop.f32.mrf.mxu0
    %v693 = vadd.f32 0.0, %v692
    %v694 = vpop.f32.mrf.mxu0
    %695 = vmatprep.mubr.bf16.mxu0 0
    %696 = vmatmul.mubr.bf16.gmra.mxu0 %v653
    %v697 = vpop.f32.mrf.mxu0
    %v698 = vadd.f32 0.0, %v697
    %v699 = vpop.f32.mrf.mxu0
    %v700 = vpop.f32.mrf.mxu0
    %v701 = vadd.f32 0.0, %v700
    %v702 = vpop.f32.mrf.mxu0
    %703 = vdwg.mxu0
    %s704 = scalar_lea.vmem %s4, 2
    %v705 = vld [vmem:[%s704] sm:$0x1]
    %s706 = scalar_lea.vmem %s8, 96
    %v707 = vld [vmem:[%s706] sm:$0xff]
    %v708 = vld [vmem:[%s706 + $0x8] sm:$0xff]
    %v709 = vld [vmem:[%s706 + $0x10] sm:$0xff]
    %v710 = vld [vmem:[%s706 + $0x18] sm:$0xff]
    %s711 = scalar_lea.vmem %s7, 48
    %v712 = vld [vmem:[%s711] sm:$0xf]
    %v713 = vld [vmem:[%s711 + $0x4] sm:$0xf]
    %v714 = vld [vmem:[%s711 + $0x8] sm:$0xf]
    %v715 = vld [vmem:[%s711 + $0xc] sm:$0xf]
    %v716 = vpack.c.bf16 %v693, %v690
    %v717 = vpack.c.bf16 %v701, %v698
    %v722 = vunpack.c.l.b16 %v712
    %v723 = vunpack.c.l.b16 %v713
    %v724 = vunpack.c.l.b16 %v714
    %v725 = vunpack.c.l.b16 %v715
    %v726 = vpack.c.b16 %v723, %v722
    %v727 = vpack.c.b16 %v725, %v724
    %730 = vrot.lane.b32.xlu0 %v716, 96
    %v731 = vpop.permute.xlu0 %730
    %732 = vrot.lane.b32.xlu0 %v717, 96
    %v733 = vpop.permute.xlu0 %732
    %v737 = vsel %vm124, %v726, 0
    %v740 = vsel %vm124, %v727, 0
    %742 = vmatprep.subr.bf16.mxu0 0
    %743 = vmatpush1.bf16.msra.mxu0 0
    %744 = vmatprep.subr.bf16.mxu0 0
    %745 = vmatpush1.bf16.msra.mxu0 0
    %746 = vmatprep.subr.bf16.mxu0 0
    %747 = vmatpush1.bf16.msra.mxu0 0
    %748 = vmatprep.subr.bf16.mxu0 0
    %749 = vmatpush1.bf16.msra.mxu0 0
    %750 = vmatprep.subr.bf16.mxu0 0
    %751 = vmatpush1.bf16.msra.mxu0 0
    %752 = vmatprep.subr.bf16.mxu0 0
    %753 = vmatpush1.bf16.msra.mxu0 0
    %754 = vmatprep.subr.bf16.mxu0 0
    %755 = vmatpush1.bf16.msra.mxu0 %v733
    %756 = vmatprep.subr.bf16.mxu0 0
    %757 = vmatpush1.bf16.msra.mxu0 %v731
    %758 = vmatprep.subr.bf16.mxu0 0
    %759 = vmatpush2.bf16.msra.mxu0 0
    %760 = vmatprep.subr.bf16.mxu0 0
    %761 = vmatpush2.bf16.msra.mxu0 0
    %762 = vmatprep.subr.bf16.mxu0 0
    %763 = vmatpush2.bf16.msra.mxu0 0
    %764 = vmatprep.subr.bf16.mxu0 0
    %765 = vmatpush2.bf16.msra.mxu0 0
    %766 = vmatprep.subr.bf16.mxu0 0
    %767 = vmatpush2.bf16.msra.mxu0 0
    %768 = vmatprep.subr.bf16.mxu0 0
    %769 = vmatpush2.bf16.msra.mxu0 0
    %770 = vmatprep.subr.bf16.mxu0 0
    %771 = vmatpush2.bf16.msra.mxu0 0
    %772 = vmatprep.subr.bf16.mxu0 0
    %773 = vmatpush2.bf16.msra.mxu0 0
    %774 = vmatprep.mubr.bf16.mxu0 0
    %775 = vmatmul.mubr.bf16.gmra.mxu0 %v737
    %v776 = vpop.f32.mrf.mxu0
    %v777 = vadd.f32 0.0, %v776
    %v778 = vpop.f32.mrf.mxu0
    %v779 = vpop.f32.mrf.mxu0
    %v780 = vadd.f32 0.0, %v779
    %v781 = vpop.f32.mrf.mxu0
    %782 = vmatprep.mubr.bf16.mxu0 0
    %783 = vmatmul.mubr.bf16.gmra.mxu0 %v740
    %v784 = vpop.f32.mrf.mxu0
    %v785 = vadd.f32 0.0, %v784
    %v786 = vpop.f32.mrf.mxu0
    %v787 = vpop.f32.mrf.mxu0
    %v788 = vadd.f32 0.0, %v787
    %v789 = vpop.f32.mrf.mxu0
    %790 = vdwg.mxu0
    %792 = vset.pattern.permute.xlu0 0
    %793 = vperm.xlu0 %792, %v707
    %v794 = vpop.permute.xlu0 %793
    %797 = vset.pattern.permute.xlu0 0
    %798 = vperm.xlu0 %797, %v708
    %v799 = vpop.permute.xlu0 %798
    %802 = vset.pattern.permute.xlu0 0
    %803 = vperm.xlu0 %802, %v709
    %v804 = vpop.permute.xlu0 %803
    %807 = vset.pattern.permute.xlu0 0
    %808 = vperm.xlu0 %807, %v710
    %v809 = vpop.permute.xlu0 %808
    %v811 = vmul.f32 %v794, %v690
    %v812 = vmul.f32 %v799, %v693
    %v813 = vmul.f32 %v804, %v698
    %v814 = vmul.f32 %v809, %v701
    %v815 = vadd.f32 %v811, %v777
    %v816 = vadd.f32 %v812, %v780
    %v817 = vadd.f32 %v813, %v785
    %v818 = vadd.f32 %v814, %v788
    %v820 = vlaneseq
    %v821 = vshrl.u32 %v820, 7
    %v822 = vsub.s32 0, %v821
    %v823 = vrot.slane %v705, %v822
    %v825 = vadd.f32 %v815, %v823
    %v826 = vadd.f32 %v816, %v823
    %v827 = vadd.f32 %v817, %v823
    %v828 = vadd.f32 %v818, %v823
    %v829 = vmax.f32 %v825, 0.0
    %v830 = vmax.f32 %v826, 0.0
    %v831 = vmax.f32 %v827, 0.0
    %v832 = vmax.f32 %v828, 0.0
    %s833 = scalar_lea.vmem %s3, 48
    %v834 = vld [vmem:[%s833] sm:$0xf]
    %v835 = vld [vmem:[%s833 + $0x4] sm:$0xf]
    %v836 = vld [vmem:[%s833 + $0x8] sm:$0xf]
    %v837 = vld [vmem:[%s833 + $0xc] sm:$0xf]
    %v838 = vpack.c.bf16 %v830, %v829
    %v839 = vpack.c.bf16 %v832, %v831
    %v844 = vunpack.c.l.b16 %v834
    %v845 = vunpack.c.l.b16 %v835
    %v846 = vunpack.c.l.b16 %v836
    %v847 = vunpack.c.l.b16 %v837
    %v848 = vpack.c.b16 %v845, %v844
    %v849 = vpack.c.b16 %v847, %v846
    %v853 = vsel %vm124, %v838, 0
    %v856 = vsel %vm124, %v839, 0
    %858 = vmatprep.subr.bf16.mxu0 0
    %859 = vmatpush1.bf16.msra.mxu0 0
    %860 = vmatprep.subr.bf16.mxu0 0
    %861 = vmatpush1.bf16.msra.mxu0 0
    %862 = vmatprep.subr.bf16.mxu0 0
    %863 = vmatpush1.bf16.msra.mxu0 0
    %864 = vmatprep.subr.bf16.mxu0 0
    %865 = vmatpush1.bf16.msra.mxu0 0
    %866 = vmatprep.subr.bf16.mxu0 0
    %867 = vmatpush1.bf16.msra.mxu0 0
    %868 = vmatprep.subr.bf16.mxu0 0
    %869 = vmatpush1.bf16.msra.mxu0 0
    %870 = vmatprep.subr.bf16.mxu0 0
    %871 = vmatpush1.bf16.msra.mxu0 %v849
    %872 = vmatprep.subr.bf16.mxu0 0
    %873 = vmatpush1.bf16.msra.mxu0 %v848
    %874 = vmatprep.subr.bf16.mxu0 0
    %875 = vmatpush2.bf16.msra.mxu0 0
    %876 = vmatprep.subr.bf16.mxu0 0
    %877 = vmatpush2.bf16.msra.mxu0 0
    %878 = vmatprep.subr.bf16.mxu0 0
    %879 = vmatpush2.bf16.msra.mxu0 0
    %880 = vmatprep.subr.bf16.mxu0 0
    %881 = vmatpush2.bf16.msra.mxu0 0
    %882 = vmatprep.subr.bf16.mxu0 0
    %883 = vmatpush2.bf16.msra.mxu0 0
    %884 = vmatprep.subr.bf16.mxu0 0
    %885 = vmatpush2.bf16.msra.mxu0 0
    %886 = vmatprep.subr.bf16.mxu0 0
    %887 = vmatpush2.bf16.msra.mxu0 0
    %888 = vmatprep.subr.bf16.mxu0 0
    %889 = vmatpush2.bf16.msra.mxu0 0
    %890 = vmatprep.mubr.bf16.mxu0 0
    %891 = vmatmul.mubr.bf16.gmra.mxu0 %v853
    %v892 = vpop.f32.mrf.mxu0
    %v893 = vadd.f32 0.0, %v892
    %v894 = vpop.f32.mrf.mxu0
    %v895 = vpop.f32.mrf.mxu0
    %v896 = vadd.f32 0.0, %v895
    %v897 = vpop.f32.mrf.mxu0
    %898 = vmatprep.mubr.bf16.mxu0 0
    %899 = vmatmul.mubr.bf16.gmra.mxu0 %v856
    %v900 = vpop.f32.mrf.mxu0
    %v901 = vadd.f32 0.0, %v900
    %v902 = vpop.f32.mrf.mxu0
    %v903 = vpop.f32.mrf.mxu0
    %v904 = vadd.f32 0.0, %v903
    %v905 = vpop.f32.mrf.mxu0
    %906 = vdwg.mxu0
    %s907 = scalar_lea.vmem %s4, 3
    %v908 = vld [vmem:[%s907] sm:$0x1]
    %s909 = scalar_lea.vmem %s8, 128
    %v910 = vld [vmem:[%s909] sm:$0xff]
    %v911 = vld [vmem:[%s909 + $0x8] sm:$0xff]
    %v912 = vld [vmem:[%s909 + $0x10] sm:$0xff]
    %v913 = vld [vmem:[%s909 + $0x18] sm:$0xff]
    %s914 = scalar_lea.vmem %s7, 64
    %v915 = vld [vmem:[%s914] sm:$0xf]
    %v916 = vld [vmem:[%s914 + $0x4] sm:$0xf]
    %v917 = vld [vmem:[%s914 + $0x8] sm:$0xf]
    %v918 = vld [vmem:[%s914 + $0xc] sm:$0xf]
    %v919 = vpack.c.bf16 %v896, %v893
    %v920 = vpack.c.bf16 %v904, %v901
    %v925 = vunpack.c.l.b16 %v915
    %v926 = vunpack.c.l.b16 %v916
    %v927 = vunpack.c.l.b16 %v917
    %v928 = vunpack.c.l.b16 %v918
    %v929 = vpack.c.b16 %v926, %v925
    %v930 = vpack.c.b16 %v928, %v927
    %933 = vrot.lane.b32.xlu0 %v919, 96
    %v934 = vpop.permute.xlu0 %933
    %935 = vrot.lane.b32.xlu0 %v920, 96
    %v936 = vpop.permute.xlu0 %935
    %v940 = vsel %vm124, %v929, 0
    %v943 = vsel %vm124, %v930, 0
    %945 = vmatprep.subr.bf16.mxu0 0
    %946 = vmatpush1.bf16.msra.mxu0 0
    %947 = vmatprep.subr.bf16.mxu0 0
    %948 = vmatpush1.bf16.msra.mxu0 0
    %949 = vmatprep.subr.bf16.mxu0 0
    %950 = vmatpush1.bf16.msra.mxu0 0
    %951 = vmatprep.subr.bf16.mxu0 0
    %952 = vmatpush1.bf16.msra.mxu0 0
    %953 = vmatprep.subr.bf16.mxu0 0
    %954 = vmatpush1.bf16.msra.mxu0 0
    %955 = vmatprep.subr.bf16.mxu0 0
    %956 = vmatpush1.bf16.msra.mxu0 0
    %957 = vmatprep.subr.bf16.mxu0 0
    %958 = vmatpush1.bf16.msra.mxu0 %v936
    %959 = vmatprep.subr.bf16.mxu0 0
    %960 = vmatpush1.bf16.msra.mxu0 %v934
    %961 = vmatprep.subr.bf16.mxu0 0
    %962 = vmatpush2.bf16.msra.mxu0 0
    %963 = vmatprep.subr.bf16.mxu0 0
    %964 = vmatpush2.bf16.msra.mxu0 0
    %965 = vmatprep.subr.bf16.mxu0 0
    %966 = vmatpush2.bf16.msra.mxu0 0
    %967 = vmatprep.subr.bf16.mxu0 0
    %968 = vmatpush2.bf16.msra.mxu0 0
    %969 = vmatprep.subr.bf16.mxu0 0
    %970 = vmatpush2.bf16.msra.mxu0 0
    %971 = vmatprep.subr.bf16.mxu0 0
    %972 = vmatpush2.bf16.msra.mxu0 0
    %973 = vmatprep.subr.bf16.mxu0 0
    %974 = vmatpush2.bf16.msra.mxu0 0
    %975 = vmatprep.subr.bf16.mxu0 0
    %976 = vmatpush2.bf16.msra.mxu0 0
    %977 = vmatprep.mubr.bf16.mxu0 0
    %978 = vmatmul.mubr.bf16.gmra.mxu0 %v940
    %v979 = vpop.f32.mrf.mxu0
    %v980 = vadd.f32 0.0, %v979
    %v981 = vpop.f32.mrf.mxu0
    %v982 = vpop.f32.mrf.mxu0
    %v983 = vadd.f32 0.0, %v982
    %v984 = vpop.f32.mrf.mxu0
    %985 = vmatprep.mubr.bf16.mxu0 0
    %986 = vmatmul.mubr.bf16.gmra.mxu0 %v943
    %v987 = vpop.f32.mrf.mxu0
    %v988 = vadd.f32 0.0, %v987
    %v989 = vpop.f32.mrf.mxu0
    %v990 = vpop.f32.mrf.mxu0
    %v991 = vadd.f32 0.0, %v990
    %v992 = vpop.f32.mrf.mxu0
    %993 = vdwg.mxu0
    %995 = vset.pattern.permute.xlu0 0
    %996 = vperm.xlu0 %995, %v910
    %v997 = vpop.permute.xlu0 %996
    %1000 = vset.pattern.permute.xlu0 0
    %1001 = vperm.xlu0 %1000, %v911
    %v1002 = vpop.permute.xlu0 %1001
    %1005 = vset.pattern.permute.xlu0 0
    %1006 = vperm.xlu0 %1005, %v912
    %v1007 = vpop.permute.xlu0 %1006
    %1010 = vset.pattern.permute.xlu0 0
    %1011 = vperm.xlu0 %1010, %v913
    %v1012 = vpop.permute.xlu0 %1011
    %v1014 = vmul.f32 %v997, %v893
    %v1015 = vmul.f32 %v1002, %v896
    %v1016 = vmul.f32 %v1007, %v901
    %v1017 = vmul.f32 %v1012, %v904
    %v1018 = vadd.f32 %v1014, %v980
    %v1019 = vadd.f32 %v1015, %v983
    %v1020 = vadd.f32 %v1016, %v988
    %v1021 = vadd.f32 %v1017, %v991
    %v1023 = vlaneseq
    %v1024 = vshrl.u32 %v1023, 7
    %v1025 = vsub.s32 0, %v1024
    %v1026 = vrot.slane %v908, %v1025
    %v1028 = vadd.f32 %v1018, %v1026
    %v1029 = vadd.f32 %v1019, %v1026
    %v1030 = vadd.f32 %v1020, %v1026
    %v1031 = vadd.f32 %v1021, %v1026
    %v1032 = vmax.f32 %v1028, 0.0
    %v1033 = vmax.f32 %v1029, 0.0
    %v1034 = vmax.f32 %v1030, 0.0
    %v1035 = vmax.f32 %v1031, 0.0
    %v1036 = vadd.f32 %v626, %v1032
    %v1037 = vadd.f32 %v627, %v1033
    %v1038 = vadd.f32 %v628, %v1034
    %v1039 = vadd.f32 %v629, %v1035
    %s1040 = scalar_lea.vmem %s3, 64
    %v1041 = vld [vmem:[%s1040] sm:$0xf]
    %v1042 = vld [vmem:[%s1040 + $0x4] sm:$0xf]
    %v1043 = vld [vmem:[%s1040 + $0x8] sm:$0xf]
    %v1044 = vld [vmem:[%s1040 + $0xc] sm:$0xf]
    %v1045 = vpack.c.bf16 %v1037, %v1036
    %v1046 = vpack.c.bf16 %v1039, %v1038
    %v1051 = vunpack.c.l.b16 %v1041
    %v1052 = vunpack.c.l.b16 %v1042
    %v1053 = vunpack.c.l.b16 %v1043
    %v1054 = vunpack.c.l.b16 %v1044
    %v1055 = vpack.c.b16 %v1052, %v1051
    %v1056 = vpack.c.b16 %v1054, %v1053
    %v1060 = vsel %vm124, %v1045, 0
    %v1063 = vsel %vm124, %v1046, 0
    %1065 = vmatprep.subr.bf16.mxu0 0
    %1066 = vmatpush1.bf16.msra.mxu0 0
    %1067 = vmatprep.subr.bf16.mxu0 0
    %1068 = vmatpush1.bf16.msra.mxu0 0
    %1069 = vmatprep.subr.bf16.mxu0 0
    %1070 = vmatpush1.bf16.msra.mxu0 0
    %1071 = vmatprep.subr.bf16.mxu0 0
    %1072 = vmatpush1.bf16.msra.mxu0 0
    %1073 = vmatprep.subr.bf16.mxu0 0
    %1074 = vmatpush1.bf16.msra.mxu0 0
    %1075 = vmatprep.subr.bf16.mxu0 0
    %1076 = vmatpush1.bf16.msra.mxu0 0
    %1077 = vmatprep.subr.bf16.mxu0 0
    %1078 = vmatpush1.bf16.msra.mxu0 %v1056
    %1079 = vmatprep.subr.bf16.mxu0 0
    %1080 = vmatpush1.bf16.msra.mxu0 %v1055
    %1081 = vmatprep.subr.bf16.mxu0 0
    %1082 = vmatpush2.bf16.msra.mxu0 0
    %1083 = vmatprep.subr.bf16.mxu0 0
    %1084 = vmatpush2.bf16.msra.mxu0 0
    %1085 = vmatprep.subr.bf16.mxu0 0
    %1086 = vmatpush2.bf16.msra.mxu0 0
    %1087 = vmatprep.subr.bf16.mxu0 0
    %1088 = vmatpush2.bf16.msra.mxu0 0
    %1089 = vmatprep.subr.bf16.mxu0 0
    %1090 = vmatpush2.bf16.msra.mxu0 0
    %1091 = vmatprep.subr.bf16.mxu0 0
    %1092 = vmatpush2.bf16.msra.mxu0 0
    %1093 = vmatprep.subr.bf16.mxu0 0
    %1094 = vmatpush2.bf16.msra.mxu0 0
    %1095 = vmatprep.subr.bf16.mxu0 0
    %1096 = vmatpush2.bf16.msra.mxu0 0
    %1097 = vmatprep.mubr.bf16.mxu0 0
    %1098 = vmatmul.mubr.bf16.gmra.mxu0 %v1060
    %v1099 = vpop.f32.mrf.mxu0
    %v1100 = vadd.f32 0.0, %v1099
    %v1101 = vpop.f32.mrf.mxu0
    %v1102 = vpop.f32.mrf.mxu0
    %v1103 = vadd.f32 0.0, %v1102
    %v1104 = vpop.f32.mrf.mxu0
    %1105 = vmatprep.mubr.bf16.mxu0 0
    %1106 = vmatmul.mubr.bf16.gmra.mxu0 %v1063
    %v1107 = vpop.f32.mrf.mxu0
    %v1108 = vadd.f32 0.0, %v1107
    %v1109 = vpop.f32.mrf.mxu0
    %v1110 = vpop.f32.mrf.mxu0
    %v1111 = vadd.f32 0.0, %v1110
    %v1112 = vpop.f32.mrf.mxu0
    %1113 = vdwg.mxu0
    %s1114 = scalar_lea.vmem %s4, 4
    %v1115 = vld [vmem:[%s1114] sm:$0x1]
    %s1116 = scalar_lea.vmem %s8, 160
    %v1117 = vld [vmem:[%s1116] sm:$0xff]
    %v1118 = vld [vmem:[%s1116 + $0x8] sm:$0xff]
    %v1119 = vld [vmem:[%s1116 + $0x10] sm:$0xff]
    %v1120 = vld [vmem:[%s1116 + $0x18] sm:$0xff]
    %s1121 = scalar_lea.vmem %s7, 80
    %v1122 = vld [vmem:[%s1121] sm:$0xf]
    %v1123 = vld [vmem:[%s1121 + $0x4] sm:$0xf]
    %v1124 = vld [vmem:[%s1121 + $0x8] sm:$0xf]
    %v1125 = vld [vmem:[%s1121 + $0xc] sm:$0xf]
    %v1126 = vpack.c.bf16 %v1103, %v1100
    %v1127 = vpack.c.bf16 %v1111, %v1108
    %v1132 = vunpack.c.l.b16 %v1122
    %v1133 = vunpack.c.l.b16 %v1123
    %v1134 = vunpack.c.l.b16 %v1124
    %v1135 = vunpack.c.l.b16 %v1125
    %v1136 = vpack.c.b16 %v1133, %v1132
    %v1137 = vpack.c.b16 %v1135, %v1134
    %1140 = vrot.lane.b32.xlu0 %v1126, 96
    %v1141 = vpop.permute.xlu0 %1140
    %1142 = vrot.lane.b32.xlu0 %v1127, 96
    %v1143 = vpop.permute.xlu0 %1142
    %v1147 = vsel %vm124, %v1136, 0
    %v1150 = vsel %vm124, %v1137, 0
    %1152 = vmatprep.subr.bf16.mxu0 0
    %1153 = vmatpush1.bf16.msra.mxu0 0
    %1154 = vmatprep.subr.bf16.mxu0 0
    %1155 = vmatpush1.bf16.msra.mxu0 0
    %1156 = vmatprep.subr.bf16.mxu0 0
    %1157 = vmatpush1.bf16.msra.mxu0 0
    %1158 = vmatprep.subr.bf16.mxu0 0
    %1159 = vmatpush1.bf16.msra.mxu0 0
    %1160 = vmatprep.subr.bf16.mxu0 0
    %1161 = vmatpush1.bf16.msra.mxu0 0
    %1162 = vmatprep.subr.bf16.mxu0 0
    %1163 = vmatpush1.bf16.msra.mxu0 0
    %1164 = vmatprep.subr.bf16.mxu0 0
    %1165 = vmatpush1.bf16.msra.mxu0 %v1143
    %1166 = vmatprep.subr.bf16.mxu0 0
    %1167 = vmatpush1.bf16.msra.mxu0 %v1141
    %1168 = vmatprep.subr.bf16.mxu0 0
    %1169 = vmatpush2.bf16.msra.mxu0 0
    %1170 = vmatprep.subr.bf16.mxu0 0
    %1171 = vmatpush2.bf16.msra.mxu0 0
    %1172 = vmatprep.subr.bf16.mxu0 0
    %1173 = vmatpush2.bf16.msra.mxu0 0
    %1174 = vmatprep.subr.bf16.mxu0 0
    %1175 = vmatpush2.bf16.msra.mxu0 0
    %1176 = vmatprep.subr.bf16.mxu0 0
    %1177 = vmatpush2.bf16.msra.mxu0 0
    %1178 = vmatprep.subr.bf16.mxu0 0
    %1179 = vmatpush2.bf16.msra.mxu0 0
    %1180 = vmatprep.subr.bf16.mxu0 0
    %1181 = vmatpush2.bf16.msra.mxu0 0
    %1182 = vmatprep.subr.bf16.mxu0 0
    %1183 = vmatpush2.bf16.msra.mxu0 0
    %1184 = vmatprep.mubr.bf16.mxu0 0
    %1185 = vmatmul.mubr.bf16.gmra.mxu0 %v1147
    %v1186 = vpop.f32.mrf.mxu0
    %v1187 = vadd.f32 0.0, %v1186
    %v1188 = vpop.f32.mrf.mxu0
    %v1189 = vpop.f32.mrf.mxu0
    %v1190 = vadd.f32 0.0, %v1189
    %v1191 = vpop.f32.mrf.mxu0
    %1192 = vmatprep.mubr.bf16.mxu0 0
    %1193 = vmatmul.mubr.bf16.gmra.mxu0 %v1150
    %v1194 = vpop.f32.mrf.mxu0
    %v1195 = vadd.f32 0.0, %v1194
    %v1196 = vpop.f32.mrf.mxu0
    %v1197 = vpop.f32.mrf.mxu0
    %v1198 = vadd.f32 0.0, %v1197
    %v1199 = vpop.f32.mrf.mxu0
    %1200 = vdwg.mxu0
    %1202 = vset.pattern.permute.xlu0 0
    %1203 = vperm.xlu0 %1202, %v1117
    %v1204 = vpop.permute.xlu0 %1203
    %1207 = vset.pattern.permute.xlu0 0
    %1208 = vperm.xlu0 %1207, %v1118
    %v1209 = vpop.permute.xlu0 %1208
    %1212 = vset.pattern.permute.xlu0 0
    %1213 = vperm.xlu0 %1212, %v1119
    %v1214 = vpop.permute.xlu0 %1213
    %1217 = vset.pattern.permute.xlu0 0
    %1218 = vperm.xlu0 %1217, %v1120
    %v1219 = vpop.permute.xlu0 %1218
    %v1221 = vmul.f32 %v1204, %v1100
    %v1222 = vmul.f32 %v1209, %v1103
    %v1223 = vmul.f32 %v1214, %v1108
    %v1224 = vmul.f32 %v1219, %v1111
    %v1225 = vadd.f32 %v1221, %v1187
    %v1226 = vadd.f32 %v1222, %v1190
    %v1227 = vadd.f32 %v1223, %v1195
    %v1228 = vadd.f32 %v1224, %v1198
    %v1230 = vlaneseq
    %v1231 = vshrl.u32 %v1230, 7
    %v1232 = vsub.s32 0, %v1231
    %v1233 = vrot.slane %v1115, %v1232
    %v1235 = vadd.f32 %v1225, %v1233
    %v1236 = vadd.f32 %v1226, %v1233
    %v1237 = vadd.f32 %v1227, %v1233
    %v1238 = vadd.f32 %v1228, %v1233
    %v1239 = vmax.f32 %v1235, 0.0
    %v1240 = vmax.f32 %v1236, 0.0
    %v1241 = vmax.f32 %v1237, 0.0
    %v1242 = vmax.f32 %v1238, 0.0
    %s1243 = scalar_lea.vmem %s3, 80
    %v1244 = vld [vmem:[%s1243] sm:$0xf]
    %v1245 = vld [vmem:[%s1243 + $0x4] sm:$0xf]
    %v1246 = vld [vmem:[%s1243 + $0x8] sm:$0xf]
    %v1247 = vld [vmem:[%s1243 + $0xc] sm:$0xf]
    %v1248 = vpack.c.bf16 %v1240, %v1239
    %v1249 = vpack.c.bf16 %v1242, %v1241
    %v1254 = vunpack.c.l.b16 %v1244
    %v1255 = vunpack.c.l.b16 %v1245
    %v1256 = vunpack.c.l.b16 %v1246
    %v1257 = vunpack.c.l.b16 %v1247
    %v1258 = vpack.c.b16 %v1255, %v1254
    %v1259 = vpack.c.b16 %v1257, %v1256
    %v1263 = vsel %vm124, %v1248, 0
    %v1266 = vsel %vm124, %v1249, 0
    %1268 = vmatprep.subr.bf16.mxu0 0
    %1269 = vmatpush1.bf16.msra.mxu0 0
    %1270 = vmatprep.subr.bf16.mxu0 0
    %1271 = vmatpush1.bf16.msra.mxu0 0
    %1272 = vmatprep.subr.bf16.mxu0 0
    %1273 = vmatpush1.bf16.msra.mxu0 0
    %1274 = vmatprep.subr.bf16.mxu0 0
    %1275 = vmatpush1.bf16.msra.mxu0 0
    %1276 = vmatprep.subr.bf16.mxu0 0
    %1277 = vmatpush1.bf16.msra.mxu0 0
    %1278 = vmatprep.subr.bf16.mxu0 0
    %1279 = vmatpush1.bf16.msra.mxu0 0
    %1280 = vmatprep.subr.bf16.mxu0 0
    %1281 = vmatpush1.bf16.msra.mxu0 %v1259
    %1282 = vmatprep.subr.bf16.mxu0 0
    %1283 = vmatpush1.bf16.msra.mxu0 %v1258
    %1284 = vmatprep.subr.bf16.mxu0 0
    %1285 = vmatpush2.bf16.msra.mxu0 0
    %1286 = vmatprep.subr.bf16.mxu0 0
    %1287 = vmatpush2.bf16.msra.mxu0 0
    %1288 = vmatprep.subr.bf16.mxu0 0
    %1289 = vmatpush2.bf16.msra.mxu0 0
    %1290 = vmatprep.subr.bf16.mxu0 0
    %1291 = vmatpush2.bf16.msra.mxu0 0
    %1292 = vmatprep.subr.bf16.mxu0 0
    %1293 = vmatpush2.bf16.msra.mxu0 0
    %1294 = vmatprep.subr.bf16.mxu0 0
    %1295 = vmatpush2.bf16.msra.mxu0 0
    %1296 = vmatprep.subr.bf16.mxu0 0
    %1297 = vmatpush2.bf16.msra.mxu0 0
    %1298 = vmatprep.subr.bf16.mxu0 0
    %1299 = vmatpush2.bf16.msra.mxu0 0
    %1300 = vmatprep.mubr.bf16.mxu0 0
    %1301 = vmatmul.mubr.bf16.gmra.mxu0 %v1263
    %v1302 = vpop.f32.mrf.mxu0
    %v1303 = vadd.f32 0.0, %v1302
    %v1304 = vpop.f32.mrf.mxu0
    %v1305 = vpop.f32.mrf.mxu0
    %v1306 = vadd.f32 0.0, %v1305
    %v1307 = vpop.f32.mrf.mxu0
    %1308 = vmatprep.mubr.bf16.mxu0 0
    %1309 = vmatmul.mubr.bf16.gmra.mxu0 %v1266
    %v1310 = vpop.f32.mrf.mxu0
    %v1311 = vadd.f32 0.0, %v1310
    %v1312 = vpop.f32.mrf.mxu0
    %v1313 = vpop.f32.mrf.mxu0
    %v1314 = vadd.f32 0.0, %v1313
    %v1315 = vpop.f32.mrf.mxu0
    %1316 = vdwg.mxu0
    %s1317 = scalar_lea.vmem %s4, 5
    %v1318 = vld [vmem:[%s1317] sm:$0x1]
    %s1319 = scalar_lea.vmem %s8, 192
    %v1320 = vld [vmem:[%s1319] sm:$0xff]
    %v1321 = vld [vmem:[%s1319 + $0x8] sm:$0xff]
    %v1322 = vld [vmem:[%s1319 + $0x10] sm:$0xff]
    %v1323 = vld [vmem:[%s1319 + $0x18] sm:$0xff]
    %s1324 = scalar_lea.vmem %s7, 96
    %v1325 = vld [vmem:[%s1324] sm:$0xf]
    %v1326 = vld [vmem:[%s1324 + $0x4] sm:$0xf]
    %v1327 = vld [vmem:[%s1324 + $0x8] sm:$0xf]
    %v1328 = vld [vmem:[%s1324 + $0xc] sm:$0xf]
    %v1329 = vpack.c.bf16 %v1306, %v1303
    %v1330 = vpack.c.bf16 %v1314, %v1311
    %v1335 = vunpack.c.l.b16 %v1325
    %v1336 = vunpack.c.l.b16 %v1326
    %v1337 = vunpack.c.l.b16 %v1327
    %v1338 = vunpack.c.l.b16 %v1328
    %v1339 = vpack.c.b16 %v1336, %v1335
    %v1340 = vpack.c.b16 %v1338, %v1337
    %1343 = vrot.lane.b32.xlu0 %v1329, 96
    %v1344 = vpop.permute.xlu0 %1343
    %1345 = vrot.lane.b32.xlu0 %v1330, 96
    %v1346 = vpop.permute.xlu0 %1345
    %v1350 = vsel %vm124, %v1339, 0
    %v1353 = vsel %vm124, %v1340, 0
    %1355 = vmatprep.subr.bf16.mxu0 0
    %1356 = vmatpush1.bf16.msra.mxu0 0
    %1357 = vmatprep.subr.bf16.mxu0 0
    %1358 = vmatpush1.bf16.msra.mxu0 0
    %1359 = vmatprep.subr.bf16.mxu0 0
    %1360 = vmatpush1.bf16.msra.mxu0 0
    %1361 = vmatprep.subr.bf16.mxu0 0
    %1362 = vmatpush1.bf16.msra.mxu0 0
    %1363 = vmatprep.subr.bf16.mxu0 0
    %1364 = vmatpush1.bf16.msra.mxu0 0
    %1365 = vmatprep.subr.bf16.mxu0 0
    %1366 = vmatpush1.bf16.msra.mxu0 0
    %1367 = vmatprep.subr.bf16.mxu0 0
    %1368 = vmatpush1.bf16.msra.mxu0 %v1346
    %1369 = vmatprep.subr.bf16.mxu0 0
    %1370 = vmatpush1.bf16.msra.mxu0 %v1344
    %1371 = vmatprep.subr.bf16.mxu0 0
    %1372 = vmatpush2.bf16.msra.mxu0 0
    %1373 = vmatprep.subr.bf16.mxu0 0
    %1374 = vmatpush2.bf16.msra.mxu0 0
    %1375 = vmatprep.subr.bf16.mxu0 0
    %1376 = vmatpush2.bf16.msra.mxu0 0
    %1377 = vmatprep.subr.bf16.mxu0 0
    %1378 = vmatpush2.bf16.msra.mxu0 0
    %1379 = vmatprep.subr.bf16.mxu0 0
    %1380 = vmatpush2.bf16.msra.mxu0 0
    %1381 = vmatprep.subr.bf16.mxu0 0
    %1382 = vmatpush2.bf16.msra.mxu0 0
    %1383 = vmatprep.subr.bf16.mxu0 0
    %1384 = vmatpush2.bf16.msra.mxu0 0
    %1385 = vmatprep.subr.bf16.mxu0 0
    %1386 = vmatpush2.bf16.msra.mxu0 0
    %1387 = vmatprep.mubr.bf16.mxu0 0
    %1388 = vmatmul.mubr.bf16.gmra.mxu0 %v1350
    %v1389 = vpop.f32.mrf.mxu0
    %v1390 = vadd.f32 0.0, %v1389
    %v1391 = vpop.f32.mrf.mxu0
    %v1392 = vpop.f32.mrf.mxu0
    %v1393 = vadd.f32 0.0, %v1392
    %v1394 = vpop.f32.mrf.mxu0
    %1395 = vmatprep.mubr.bf16.mxu0 0
    %1396 = vmatmul.mubr.bf16.gmra.mxu0 %v1353
    %v1397 = vpop.f32.mrf.mxu0
    %v1398 = vadd.f32 0.0, %v1397
    %v1399 = vpop.f32.mrf.mxu0
    %v1400 = vpop.f32.mrf.mxu0
    %v1401 = vadd.f32 0.0, %v1400
    %v1402 = vpop.f32.mrf.mxu0
    %1403 = vdwg.mxu0
    %1405 = vset.pattern.permute.xlu0 0
    %1406 = vperm.xlu0 %1405, %v1320
    %v1407 = vpop.permute.xlu0 %1406
    %1410 = vset.pattern.permute.xlu0 0
    %1411 = vperm.xlu0 %1410, %v1321
    %v1412 = vpop.permute.xlu0 %1411
    %1415 = vset.pattern.permute.xlu0 0
    %1416 = vperm.xlu0 %1415, %v1322
    %v1417 = vpop.permute.xlu0 %1416
    %1420 = vset.pattern.permute.xlu0 0
    %1421 = vperm.xlu0 %1420, %v1323
    %v1422 = vpop.permute.xlu0 %1421
    %v1424 = vmul.f32 %v1407, %v1303
    %v1425 = vmul.f32 %v1412, %v1306
    %v1426 = vmul.f32 %v1417, %v1311
    %v1427 = vmul.f32 %v1422, %v1314
    %v1428 = vadd.f32 %v1424, %v1390
    %v1429 = vadd.f32 %v1425, %v1393
    %v1430 = vadd.f32 %v1426, %v1398
    %v1431 = vadd.f32 %v1427, %v1401
    %v1433 = vlaneseq
    %v1434 = vshrl.u32 %v1433, 7
    %v1435 = vsub.s32 0, %v1434
    %v1436 = vrot.slane %v1318, %v1435
    %v1438 = vadd.f32 %v1428, %v1436
    %v1439 = vadd.f32 %v1429, %v1436
    %v1440 = vadd.f32 %v1430, %v1436
    %v1441 = vadd.f32 %v1431, %v1436
    %v1442 = vmax.f32 %v1438, 0.0
    %v1443 = vmax.f32 %v1439, 0.0
    %v1444 = vmax.f32 %v1440, 0.0
    %v1445 = vmax.f32 %v1441, 0.0
    %v1446 = vadd.f32 %v1036, %v1442
    %v1447 = vadd.f32 %v1037, %v1443
    %v1448 = vadd.f32 %v1038, %v1444
    %v1449 = vadd.f32 %v1039, %v1445
    %s1450 = scalar_lea.vmem %s3, 96
    %v1451 = vld [vmem:[%s1450] sm:$0xf]
    %v1452 = vld [vmem:[%s1450 + $0x4] sm:$0xf]
    %v1453 = vld [vmem:[%s1450 + $0x8] sm:$0xf]
    %v1454 = vld [vmem:[%s1450 + $0xc] sm:$0xf]
    %v1455 = vpack.c.bf16 %v1447, %v1446
    %v1456 = vpack.c.bf16 %v1449, %v1448
    %v1461 = vunpack.c.l.b16 %v1451
    %v1462 = vunpack.c.l.b16 %v1452
    %v1463 = vunpack.c.l.b16 %v1453
    %v1464 = vunpack.c.l.b16 %v1454
    %v1465 = vpack.c.b16 %v1462, %v1461
    %v1466 = vpack.c.b16 %v1464, %v1463
    %v1470 = vsel %vm124, %v1455, 0
    %v1473 = vsel %vm124, %v1456, 0
    %1475 = vmatprep.subr.bf16.mxu0 0
    %1476 = vmatpush1.bf16.msra.mxu0 0
    %1477 = vmatprep.subr.bf16.mxu0 0
    %1478 = vmatpush1.bf16.msra.mxu0 0
    %1479 = vmatprep.subr.bf16.mxu0 0
    %1480 = vmatpush1.bf16.msra.mxu0 0
    %1481 = vmatprep.subr.bf16.mxu0 0
    %1482 = vmatpush1.bf16.msra.mxu0 0
    %1483 = vmatprep.subr.bf16.mxu0 0
    %1484 = vmatpush1.bf16.msra.mxu0 0
    %1485 = vmatprep.subr.bf16.mxu0 0
    %1486 = vmatpush1.bf16.msra.mxu0 0
    %1487 = vmatprep.subr.bf16.mxu0 0
    %1488 = vmatpush1.bf16.msra.mxu0 %v1466
    %1489 = vmatprep.subr.bf16.mxu0 0
    %1490 = vmatpush1.bf16.msra.mxu0 %v1465
    %1491 = vmatprep.subr.bf16.mxu0 0
    %1492 = vmatpush2.bf16.msra.mxu0 0
    %1493 = vmatprep.subr.bf16.mxu0 0
    %1494 = vmatpush2.bf16.msra.mxu0 0
    %1495 = vmatprep.subr.bf16.mxu0 0
    %1496 = vmatpush2.bf16.msra.mxu0 0
    %1497 = vmatprep.subr.bf16.mxu0 0
    %1498 = vmatpush2.bf16.msra.mxu0 0
    %1499 = vmatprep.subr.bf16.mxu0 0
    %1500 = vmatpush2.bf16.msra.mxu0 0
    %1501 = vmatprep.subr.bf16.mxu0 0
    %1502 = vmatpush2.bf16.msra.mxu0 0
    %1503 = vmatprep.subr.bf16.mxu0 0
    %1504 = vmatpush2.bf16.msra.mxu0 0
    %1505 = vmatprep.subr.bf16.mxu0 0
    %1506 = vmatpush2.bf16.msra.mxu0 0
    %1507 = vmatprep.mubr.bf16.mxu0 0
    %1508 = vmatmul.mubr.bf16.gmra.mxu0 %v1470
    %v1509 = vpop.f32.mrf.mxu0
    %v1510 = vadd.f32 0.0, %v1509
    %v1511 = vpop.f32.mrf.mxu0
    %v1512 = vpop.f32.mrf.mxu0
    %v1513 = vadd.f32 0.0, %v1512
    %v1514 = vpop.f32.mrf.mxu0
    %1515 = vmatprep.mubr.bf16.mxu0 0
    %1516 = vmatmul.mubr.bf16.gmra.mxu0 %v1473
    %v1517 = vpop.f32.mrf.mxu0
    %v1518 = vadd.f32 0.0, %v1517
    %v1519 = vpop.f32.mrf.mxu0
    %v1520 = vpop.f32.mrf.mxu0
    %v1521 = vadd.f32 0.0, %v1520
    %v1522 = vpop.f32.mrf.mxu0
    %1523 = vdwg.mxu0
    %s1524 = scalar_lea.vmem %s4, 6
    %v1525 = vld [vmem:[%s1524] sm:$0x1]
    %s1526 = scalar_lea.vmem %s8, 224
    %v1527 = vld [vmem:[%s1526] sm:$0xff]
    %v1528 = vld [vmem:[%s1526 + $0x8] sm:$0xff]
    %v1529 = vld [vmem:[%s1526 + $0x10] sm:$0xff]
    %v1530 = vld [vmem:[%s1526 + $0x18] sm:$0xff]
    %s1531 = scalar_lea.vmem %s7, 112
    %v1532 = vld [vmem:[%s1531] sm:$0xf]
    %v1533 = vld [vmem:[%s1531 + $0x4] sm:$0xf]
    %v1534 = vld [vmem:[%s1531 + $0x8] sm:$0xf]
    %v1535 = vld [vmem:[%s1531 + $0xc] sm:$0xf]
    %v1536 = vpack.c.bf16 %v1513, %v1510
    %v1537 = vpack.c.bf16 %v1521, %v1518
    %v1542 = vunpack.c.l.b16 %v1532
    %v1543 = vunpack.c.l.b16 %v1533
    %v1544 = vunpack.c.l.b16 %v1534
    %v1545 = vunpack.c.l.b16 %v1535
    %v1546 = vpack.c.b16 %v1543, %v1542
    %v1547 = vpack.c.b16 %v1545, %v1544
    %1550 = vrot.lane.b32.xlu0 %v1536, 96
    %v1551 = vpop.permute.xlu0 %1550
    %1552 = vrot.lane.b32.xlu0 %v1537, 96
    %v1553 = vpop.permute.xlu0 %1552
    %v1557 = vsel %vm124, %v1546, 0
    %v1560 = vsel %vm124, %v1547, 0
    %1562 = vmatprep.subr.bf16.mxu0 0
    %1563 = vmatpush1.bf16.msra.mxu0 0
    %1564 = vmatprep.subr.bf16.mxu0 0
    %1565 = vmatpush1.bf16.msra.mxu0 0
    %1566 = vmatprep.subr.bf16.mxu0 0
    %1567 = vmatpush1.bf16.msra.mxu0 0
    %1568 = vmatprep.subr.bf16.mxu0 0
    %1569 = vmatpush1.bf16.msra.mxu0 0
    %1570 = vmatprep.subr.bf16.mxu0 0
    %1571 = vmatpush1.bf16.msra.mxu0 0
    %1572 = vmatprep.subr.bf16.mxu0 0
    %1573 = vmatpush1.bf16.msra.mxu0 0
    %1574 = vmatprep.subr.bf16.mxu0 0
    %1575 = vmatpush1.bf16.msra.mxu0 %v1553
    %1576 = vmatprep.subr.bf16.mxu0 0
    %1577 = vmatpush1.bf16.msra.mxu0 %v1551
    %1578 = vmatprep.subr.bf16.mxu0 0
    %1579 = vmatpush2.bf16.msra.mxu0 0
    %1580 = vmatprep.subr.bf16.mxu0 0
    %1581 = vmatpush2.bf16.msra.mxu0 0
    %1582 = vmatprep.subr.bf16.mxu0 0
    %1583 = vmatpush2.bf16.msra.mxu0 0
    %1584 = vmatprep.subr.bf16.mxu0 0
    %1585 = vmatpush2.bf16.msra.mxu0 0
    %1586 = vmatprep.subr.bf16.mxu0 0
    %1587 = vmatpush2.bf16.msra.mxu0 0
    %1588 = vmatprep.subr.bf16.mxu0 0
    %1589 = vmatpush2.bf16.msra.mxu0 0
    %1590 = vmatprep.subr.bf16.mxu0 0
    %1591 = vmatpush2.bf16.msra.mxu0 0
    %1592 = vmatprep.subr.bf16.mxu0 0
    %1593 = vmatpush2.bf16.msra.mxu0 0
    %1594 = vmatprep.mubr.bf16.mxu0 0
    %1595 = vmatmul.mubr.bf16.gmra.mxu0 %v1557
    %v1596 = vpop.f32.mrf.mxu0
    %v1597 = vadd.f32 0.0, %v1596
    %v1598 = vpop.f32.mrf.mxu0
    %v1599 = vpop.f32.mrf.mxu0
    %v1600 = vadd.f32 0.0, %v1599
    %v1601 = vpop.f32.mrf.mxu0
    %1602 = vmatprep.mubr.bf16.mxu0 0
    %1603 = vmatmul.mubr.bf16.gmra.mxu0 %v1560
    %v1604 = vpop.f32.mrf.mxu0
    %v1605 = vadd.f32 0.0, %v1604
    %v1606 = vpop.f32.mrf.mxu0
    %v1607 = vpop.f32.mrf.mxu0
    %v1608 = vadd.f32 0.0, %v1607
    %v1609 = vpop.f32.mrf.mxu0
    %1610 = vdwg.mxu0
    %1612 = vset.pattern.permute.xlu0 0
    %1613 = vperm.xlu0 %1612, %v1527
    %v1614 = vpop.permute.xlu0 %1613
    %1617 = vset.pattern.permute.xlu0 0
    %1618 = vperm.xlu0 %1617, %v1528
    %v1619 = vpop.permute.xlu0 %1618
    %1622 = vset.pattern.permute.xlu0 0
    %1623 = vperm.xlu0 %1622, %v1529
    %v1624 = vpop.permute.xlu0 %1623
    %1627 = vset.pattern.permute.xlu0 0
    %1628 = vperm.xlu0 %1627, %v1530
    %v1629 = vpop.permute.xlu0 %1628
    %v1631 = vmul.f32 %v1614, %v1510
    %v1632 = vmul.f32 %v1619, %v1513
    %v1633 = vmul.f32 %v1624, %v1518
    %v1634 = vmul.f32 %v1629, %v1521
    %v1635 = vadd.f32 %v1631, %v1597
    %v1636 = vadd.f32 %v1632, %v1600
    %v1637 = vadd.f32 %v1633, %v1605
    %v1638 = vadd.f32 %v1634, %v1608
    %v1640 = vlaneseq
    %v1641 = vshrl.u32 %v1640, 7
    %v1642 = vsub.s32 0, %v1641
    %v1643 = vrot.slane %v1525, %v1642
    %v1645 = vadd.f32 %v1635, %v1643
    %v1646 = vadd.f32 %v1636, %v1643
    %v1647 = vadd.f32 %v1637, %v1643
    %v1648 = vadd.f32 %v1638, %v1643
    %v1649 = vmax.f32 %v1645, 0.0
    %v1650 = vmax.f32 %v1646, 0.0
    %v1651 = vmax.f32 %v1647, 0.0
    %v1652 = vmax.f32 %v1648, 0.0
    %s1653 = scalar_lea.vmem %s3, 112
    %v1654 = vld [vmem:[%s1653] sm:$0xf]
    %v1655 = vld [vmem:[%s1653 + $0x4] sm:$0xf]
    %v1656 = vld [vmem:[%s1653 + $0x8] sm:$0xf]
    %v1657 = vld [vmem:[%s1653 + $0xc] sm:$0xf]
    %v1658 = vpack.c.bf16 %v1650, %v1649
    %v1659 = vpack.c.bf16 %v1652, %v1651
    %v1664 = vunpack.c.l.b16 %v1654
    %v1665 = vunpack.c.l.b16 %v1655
    %v1666 = vunpack.c.l.b16 %v1656
    %v1667 = vunpack.c.l.b16 %v1657
    %v1668 = vpack.c.b16 %v1665, %v1664
    %v1669 = vpack.c.b16 %v1667, %v1666
    %v1673 = vsel %vm124, %v1658, 0
    %v1676 = vsel %vm124, %v1659, 0
    %1678 = vmatprep.subr.bf16.mxu0 0
    %1679 = vmatpush1.bf16.msra.mxu0 0
    %1680 = vmatprep.subr.bf16.mxu0 0
    %1681 = vmatpush1.bf16.msra.mxu0 0
    %1682 = vmatprep.subr.bf16.mxu0 0
    %1683 = vmatpush1.bf16.msra.mxu0 0
    %1684 = vmatprep.subr.bf16.mxu0 0
    %1685 = vmatpush1.bf16.msra.mxu0 0
    %1686 = vmatprep.subr.bf16.mxu0 0
    %1687 = vmatpush1.bf16.msra.mxu0 0
    %1688 = vmatprep.subr.bf16.mxu0 0
    %1689 = vmatpush1.bf16.msra.mxu0 0
    %1690 = vmatprep.subr.bf16.mxu0 0
    %1691 = vmatpush1.bf16.msra.mxu0 %v1669
    %1692 = vmatprep.subr.bf16.mxu0 0
    %1693 = vmatpush1.bf16.msra.mxu0 %v1668
    %1694 = vmatprep.subr.bf16.mxu0 0
    %1695 = vmatpush2.bf16.msra.mxu0 0
    %1696 = vmatprep.subr.bf16.mxu0 0
    %1697 = vmatpush2.bf16.msra.mxu0 0
    %1698 = vmatprep.subr.bf16.mxu0 0
    %1699 = vmatpush2.bf16.msra.mxu0 0
    %1700 = vmatprep.subr.bf16.mxu0 0
    %1701 = vmatpush2.bf16.msra.mxu0 0
    %1702 = vmatprep.subr.bf16.mxu0 0
    %1703 = vmatpush2.bf16.msra.mxu0 0
    %1704 = vmatprep.subr.bf16.mxu0 0
    %1705 = vmatpush2.bf16.msra.mxu0 0
    %1706 = vmatprep.subr.bf16.mxu0 0
    %1707 = vmatpush2.bf16.msra.mxu0 0
    %1708 = vmatprep.subr.bf16.mxu0 0
    %1709 = vmatpush2.bf16.msra.mxu0 0
    %1710 = vmatprep.mubr.bf16.mxu0 0
    %1711 = vmatmul.mubr.bf16.gmra.mxu0 %v1673
    %v1712 = vpop.f32.mrf.mxu0
    %v1713 = vadd.f32 0.0, %v1712
    %v1714 = vpop.f32.mrf.mxu0
    %v1715 = vpop.f32.mrf.mxu0
    %v1716 = vadd.f32 0.0, %v1715
    %v1717 = vpop.f32.mrf.mxu0
    %1718 = vmatprep.mubr.bf16.mxu0 0
    %1719 = vmatmul.mubr.bf16.gmra.mxu0 %v1676
    %v1720 = vpop.f32.mrf.mxu0
    %v1721 = vadd.f32 0.0, %v1720
    %v1722 = vpop.f32.mrf.mxu0
    %v1723 = vpop.f32.mrf.mxu0
    %v1724 = vadd.f32 0.0, %v1723
    %v1725 = vpop.f32.mrf.mxu0
    %1726 = vdwg.mxu0
    %s1727 = scalar_lea.vmem %s4, 7
    %v1728 = vld [vmem:[%s1727] sm:$0x1]
    %s1729 = scalar_lea.vmem %s8, 256
    %v1730 = vld [vmem:[%s1729] sm:$0xff]
    %v1731 = vld [vmem:[%s1729 + $0x8] sm:$0xff]
    %v1732 = vld [vmem:[%s1729 + $0x10] sm:$0xff]
    %v1733 = vld [vmem:[%s1729 + $0x18] sm:$0xff]
    %s1734 = scalar_lea.vmem %s7, 128
    %v1735 = vld [vmem:[%s1734] sm:$0xf]
    %v1736 = vld [vmem:[%s1734 + $0x4] sm:$0xf]
    %v1737 = vld [vmem:[%s1734 + $0x8] sm:$0xf]
    %v1738 = vld [vmem:[%s1734 + $0xc] sm:$0xf]
    %v1739 = vpack.c.bf16 %v1716, %v1713
    %v1740 = vpack.c.bf16 %v1724, %v1721
    %v1745 = vunpack.c.l.b16 %v1735
    %v1746 = vunpack.c.l.b16 %v1736
    %v1747 = vunpack.c.l.b16 %v1737
    %v1748 = vunpack.c.l.b16 %v1738
    %v1749 = vpack.c.b16 %v1746, %v1745
    %v1750 = vpack.c.b16 %v1748, %v1747
    %1753 = vrot.lane.b32.xlu0 %v1739, 96
    %v1754 = vpop.permute.xlu0 %1753
    %1755 = vrot.lane.b32.xlu0 %v1740, 96
    %v1756 = vpop.permute.xlu0 %1755
    %v1760 = vsel %vm124, %v1749, 0
    %v1763 = vsel %vm124, %v1750, 0
    %1765 = vmatprep.subr.bf16.mxu0 0
    %1766 = vmatpush1.bf16.msra.mxu0 0
    %1767 = vmatprep.subr.bf16.mxu0 0
    %1768 = vmatpush1.bf16.msra.mxu0 0
    %1769 = vmatprep.subr.bf16.mxu0 0
    %1770 = vmatpush1.bf16.msra.mxu0 0
    %1771 = vmatprep.subr.bf16.mxu0 0
    %1772 = vmatpush1.bf16.msra.mxu0 0
    %1773 = vmatprep.subr.bf16.mxu0 0
    %1774 = vmatpush1.bf16.msra.mxu0 0
    %1775 = vmatprep.subr.bf16.mxu0 0
    %1776 = vmatpush1.bf16.msra.mxu0 0
    %1777 = vmatprep.subr.bf16.mxu0 0
    %1778 = vmatpush1.bf16.msra.mxu0 %v1756
    %1779 = vmatprep.subr.bf16.mxu0 0
    %1780 = vmatpush1.bf16.msra.mxu0 %v1754
    %1781 = vmatprep.subr.bf16.mxu0 0
    %1782 = vmatpush2.bf16.msra.mxu0 0
    %1783 = vmatprep.subr.bf16.mxu0 0
    %1784 = vmatpush2.bf16.msra.mxu0 0
    %1785 = vmatprep.subr.bf16.mxu0 0
    %1786 = vmatpush2.bf16.msra.mxu0 0
    %1787 = vmatprep.subr.bf16.mxu0 0
    %1788 = vmatpush2.bf16.msra.mxu0 0
    %1789 = vmatprep.subr.bf16.mxu0 0
    %1790 = vmatpush2.bf16.msra.mxu0 0
    %1791 = vmatprep.subr.bf16.mxu0 0
    %1792 = vmatpush2.bf16.msra.mxu0 0
    %1793 = vmatprep.subr.bf16.mxu0 0
    %1794 = vmatpush2.bf16.msra.mxu0 0
    %1795 = vmatprep.subr.bf16.mxu0 0
    %1796 = vmatpush2.bf16.msra.mxu0 0
    %1797 = vmatprep.mubr.bf16.mxu0 0
    %1798 = vmatmul.mubr.bf16.gmra.mxu0 %v1760
    %v1799 = vpop.f32.mrf.mxu0
    %v1800 = vadd.f32 0.0, %v1799
    %v1801 = vpop.f32.mrf.mxu0
    %v1802 = vpop.f32.mrf.mxu0
    %v1803 = vadd.f32 0.0, %v1802
    %v1804 = vpop.f32.mrf.mxu0
    %1805 = vmatprep.mubr.bf16.mxu0 0
    %1806 = vmatmul.mubr.bf16.gmra.mxu0 %v1763
    %v1807 = vpop.f32.mrf.mxu0
    %v1808 = vadd.f32 0.0, %v1807
    %v1809 = vpop.f32.mrf.mxu0
    %v1810 = vpop.f32.mrf.mxu0
    %v1811 = vadd.f32 0.0, %v1810
    %v1812 = vpop.f32.mrf.mxu0
    %1813 = vdwg.mxu0
    %1815 = vset.pattern.permute.xlu0 0
    %1816 = vperm.xlu0 %1815, %v1730
    %v1817 = vpop.permute.xlu0 %1816
    %1820 = vset.pattern.permute.xlu0 0
    %1821 = vperm.xlu0 %1820, %v1731
    %v1822 = vpop.permute.xlu0 %1821
    %1825 = vset.pattern.permute.xlu0 0
    %1826 = vperm.xlu0 %1825, %v1732
    %v1827 = vpop.permute.xlu0 %1826
    %1830 = vset.pattern.permute.xlu0 0
    %1831 = vperm.xlu0 %1830, %v1733
    %v1832 = vpop.permute.xlu0 %1831
    %v1834 = vmul.f32 %v1817, %v1713
    %v1835 = vmul.f32 %v1822, %v1716
    %v1836 = vmul.f32 %v1827, %v1721
    %v1837 = vmul.f32 %v1832, %v1724
    %v1838 = vadd.f32 %v1834, %v1800
    %v1839 = vadd.f32 %v1835, %v1803
    %v1840 = vadd.f32 %v1836, %v1808
    %v1841 = vadd.f32 %v1837, %v1811
    %v1843 = vlaneseq
    %v1844 = vshrl.u32 %v1843, 7
    %v1845 = vsub.s32 0, %v1844
    %v1846 = vrot.slane %v1728, %v1845
    %v1848 = vadd.f32 %v1838, %v1846
    %v1849 = vadd.f32 %v1839, %v1846
    %v1850 = vadd.f32 %v1840, %v1846
    %v1851 = vadd.f32 %v1841, %v1846
    %v1852 = vmax.f32 %v1848, 0.0
    %v1853 = vmax.f32 %v1849, 0.0
    %v1854 = vmax.f32 %v1850, 0.0
    %v1855 = vmax.f32 %v1851, 0.0
    %v1856 = vadd.f32 %v1446, %v1852
    %v1857 = vadd.f32 %v1447, %v1853
    %v1858 = vadd.f32 %v1448, %v1854
    %v1859 = vadd.f32 %v1449, %v1855
    %v1860 = vpack.c.bf16 %v1857, %v1856
    %v1861 = vpack.c.bf16 %v1859, %v1858
    %v1862 = vld [vmem:[%s5] sm:$0xff]
    %v1863 = vld [vmem:[%s5 + $0x8] sm:$0xff]
    %v1864 = vld [vmem:[%s5 + $0x10] sm:$0xff]
    %v1865 = vld [vmem:[%s5 + $0x18] sm:$0xff]
    %v1870 = vunpack.c.l.b16 %v1862
    %v1871 = vunpack.c.h.b16 %v1862
    %v1872 = vunpack.c.l.b16 %v1863
    %v1873 = vunpack.c.h.b16 %v1863
    %v1874 = vunpack.c.l.b16 %v1864
    %v1875 = vunpack.c.h.b16 %v1864
    %v1876 = vunpack.c.l.b16 %v1865
    %v1877 = vunpack.c.h.b16 %v1865
    %v1878 = vpack.c.b16 %v1872, %v1870
    %v1879 = vpack.c.b16 %v1873, %v1871
    %v1880 = vpack.c.b16 %v1876, %v1874
    %v1881 = vpack.c.b16 %v1877, %v1875
    %v1887 = vsel %vm124, %v1860, 0
    %v1890 = vsel %vm124, %v1861, 0
    %1892 = vmatprep.subr.bf16.mxu0 0
    %1893 = vmatpush1.bf16.msra.mxu0 0
    %1894 = vmatprep.subr.bf16.mxu0 0
    %1895 = vmatpush1.bf16.msra.mxu0 0
    %1896 = vmatprep.subr.bf16.mxu0 0
    %1897 = vmatpush1.bf16.msra.mxu0 0
    %1898 = vmatprep.subr.bf16.mxu0 0
    %1899 = vmatpush1.bf16.msra.mxu0 0
    %1900 = vmatprep.subr.bf16.mxu0 0
    %1901 = vmatpush1.bf16.msra.mxu0 0
    %1902 = vmatprep.subr.bf16.mxu0 0
    %1903 = vmatpush1.bf16.msra.mxu0 0
    %1904 = vmatprep.subr.bf16.mxu0 %v1881
    %1905 = vmatpush1.bf16.msra.mxu0 %v1880
    %1906 = vmatprep.subr.bf16.mxu0 %v1879
    %1907 = vmatpush1.bf16.msra.mxu0 %v1878
    %1908 = vmatprep.subr.bf16.mxu0 0
    %1909 = vmatpush2.bf16.msra.mxu0 0
    %1910 = vmatprep.subr.bf16.mxu0 0
    %1911 = vmatpush2.bf16.msra.mxu0 0
    %1912 = vmatprep.subr.bf16.mxu0 0
    %1913 = vmatpush2.bf16.msra.mxu0 0
    %1914 = vmatprep.subr.bf16.mxu0 0
    %1915 = vmatpush2.bf16.msra.mxu0 0
    %1916 = vmatprep.subr.bf16.mxu0 0
    %1917 = vmatpush2.bf16.msra.mxu0 0
    %1918 = vmatprep.subr.bf16.mxu0 0
    %1919 = vmatpush2.bf16.msra.mxu0 0
    %1920 = vmatprep.subr.bf16.mxu0 0
    %1921 = vmatpush2.bf16.msra.mxu0 0
    %1922 = vmatprep.subr.bf16.mxu0 0
    %1923 = vmatpush2.bf16.msra.mxu0 0
    %1924 = vmatprep.mubr.bf16.mxu0 0
    %1925 = vmatmul.mubr.bf16.gmra.mxu0 %v1887
    %v1926 = vpop.f32.mrf.mxu0
    %v1927 = vadd.f32 0.0, %v1926
    %v1928 = vpop.f32.mrf.mxu0
    %v1929 = vadd.f32 0.0, %v1928
    %v1930 = vpop.f32.mrf.mxu0
    %v1931 = vadd.f32 0.0, %v1930
    %v1932 = vpop.f32.mrf.mxu0
    %v1933 = vadd.f32 0.0, %v1932
    %1934 = vmatprep.mubr.bf16.mxu0 0
    %1935 = vmatmul.mubr.bf16.gmra.mxu0 %v1890
    %v1936 = vpop.f32.mrf.mxu0
    %v1937 = vadd.f32 0.0, %v1936
    %v1938 = vpop.f32.mrf.mxu0
    %v1939 = vadd.f32 0.0, %v1938
    %v1940 = vpop.f32.mrf.mxu0
    %v1941 = vadd.f32 0.0, %v1940
    %v1942 = vpop.f32.mrf.mxu0
    %v1943 = vadd.f32 0.0, %v1942
    %1944 = vdwg.mxu0
    %v1945 = vld [vmem:[%s6] sm:$0x1]
    %s1946 = scalar_lea.vmem %s8, 288
    %v1947 = vld [vmem:[%s1946] sm:$0xff]
    %v1948 = vld [vmem:[%s1946 + $0x8] sm:$0xff]
    %v1949 = vld [vmem:[%s1946 + $0x10] sm:$0xff]
    %v1950 = vld [vmem:[%s1946 + $0x18] sm:$0xff]
    %s1951 = scalar_lea.vmem %s7, 144
    %v1952 = vld [vmem:[%s1951] sm:$0xf]
    %v1953 = vld [vmem:[%s1951 + $0x4] sm:$0xf]
    %v1954 = vld [vmem:[%s1951 + $0x8] sm:$0xf]
    %v1955 = vld [vmem:[%s1951 + $0xc] sm:$0xf]
    %v1956 = vpack.c.bf16 %v1933, %v1929
    %v1957 = vpack.c.bf16 %v1943, %v1939
    %v1962 = vunpack.c.l.b16 %v1952
    %v1963 = vunpack.c.l.b16 %v1953
    %v1964 = vunpack.c.l.b16 %v1954
    %v1965 = vunpack.c.l.b16 %v1955
    %v1966 = vpack.c.b16 %v1963, %v1962
    %v1967 = vpack.c.b16 %v1965, %v1964
    %v1969 = vsel %vm124, %v1966, 0
    %v1972 = vsel %vm124, %v1967, 0
    %1974 = vmatprep.subr.bf16.mxu0 0
    %1975 = vmatpush1.bf16.msra.mxu0 0
    %1976 = vmatprep.subr.bf16.mxu0 0
    %1977 = vmatpush1.bf16.msra.mxu0 0
    %1978 = vmatprep.subr.bf16.mxu0 0
    %1979 = vmatpush1.bf16.msra.mxu0 0
    %1980 = vmatprep.subr.bf16.mxu0 0
    %1981 = vmatpush1.bf16.msra.mxu0 0
    %1982 = vmatprep.subr.bf16.mxu0 0
    %1983 = vmatpush1.bf16.msra.mxu0 0
    %1984 = vmatprep.subr.bf16.mxu0 0
    %1985 = vmatpush1.bf16.msra.mxu0 0
    %1986 = vmatprep.subr.bf16.mxu0 0
    %1987 = vmatpush1.bf16.msra.mxu0 %v1957
    %1988 = vmatprep.subr.bf16.mxu0 0
    %1989 = vmatpush1.bf16.msra.mxu0 %v1956
    %1990 = vmatprep.subr.bf16.mxu0 0
    %1991 = vmatpush2.bf16.msra.mxu0 0
    %1992 = vmatprep.subr.bf16.mxu0 0
    %1993 = vmatpush2.bf16.msra.mxu0 0
    %1994 = vmatprep.subr.bf16.mxu0 0
    %1995 = vmatpush2.bf16.msra.mxu0 0
    %1996 = vmatprep.subr.bf16.mxu0 0
    %1997 = vmatpush2.bf16.msra.mxu0 0
    %1998 = vmatprep.subr.bf16.mxu0 0
    %1999 = vmatpush2.bf16.msra.mxu0 0
    %2000 = vmatprep.subr.bf16.mxu0 0
    %2001 = vmatpush2.bf16.msra.mxu0 0
    %2002 = vmatprep.subr.bf16.mxu0 0
    %2003 = vmatpush2.bf16.msra.mxu0 0
    %2004 = vmatprep.subr.bf16.mxu0 0
    %2005 = vmatpush2.bf16.msra.mxu0 0
    %2006 = vmatprep.mubr.bf16.mxu0 0
    %2007 = vmatmul.mubr.bf16.gmra.mxu0 %v1969
    %v2008 = vpop.f32.mrf.mxu0
    %v2009 = vadd.f32 0.0, %v2008
    %v2010 = vpop.f32.mrf.mxu0
    %v2011 = vpop.f32.mrf.mxu0
    %v2012 = vadd.f32 0.0, %v2011
    %v2013 = vpop.f32.mrf.mxu0
    %2014 = vmatprep.mubr.bf16.mxu0 0
    %2015 = vmatmul.mubr.bf16.gmra.mxu0 %v1972
    %v2016 = vpop.f32.mrf.mxu0
    %v2017 = vadd.f32 0.0, %v2016
    %v2018 = vpop.f32.mrf.mxu0
    %v2019 = vpop.f32.mrf.mxu0
    %v2020 = vadd.f32 0.0, %v2019
    %v2021 = vpop.f32.mrf.mxu0
    %2022 = vdwg.mxu0
    %2024 = vset.pattern.permute.xlu0 0
    %2025 = vperm.xlu0 %2024, %v1947
    %v2026 = vpop.permute.xlu0 %2025
    %2029 = vset.pattern.permute.xlu0 0
    %2030 = vperm.xlu0 %2029, %v1948
    %v2031 = vpop.permute.xlu0 %2030
    %2034 = vset.pattern.permute.xlu0 0
    %2035 = vperm.xlu0 %2034, %v1949
    %v2036 = vpop.permute.xlu0 %2035
    %2039 = vset.pattern.permute.xlu0 0
    %2040 = vperm.xlu0 %2039, %v1950
    %v2041 = vpop.permute.xlu0 %2040
    %v2043 = vmul.f32 %v2026, %v1927
    %v2044 = vmul.f32 %v2031, %v1931
    %v2045 = vmul.f32 %v2036, %v1937
    %v2046 = vmul.f32 %v2041, %v1941
    %v2047 = vadd.f32 %v2043, %v2009
    %v2048 = vadd.f32 %v2044, %v2012
    %v2049 = vadd.f32 %v2045, %v2017
    %v2050 = vadd.f32 %v2046, %v2020
    %v2052 = vlaneseq
    %v2053 = vshrl.u32 %v2052, 7
    %v2054 = vsub.s32 0, %v2053
    %v2055 = vrot.slane %v1945, %v2054
    %v2057 = vadd.f32 %v2047, %v2055
    %v2058 = vadd.f32 %v2048, %v2055
    %v2059 = vadd.f32 %v2049, %v2055
    %v2060 = vadd.f32 %v2050, %v2055
    %2061 = vst [vmem:[#allocation2] sm:$0xff] %v2057
    %2062 = vst [vmem:[#allocation2 + $0x8] sm:$0xff] %v2058
    %2063 = vst [vmem:[#allocation2 + $0x10] sm:$0xff] %v2059
    %2064 = vst [vmem:[#allocation2 + $0x18] sm:$0xff] %v2060
    // Predicated region
    $region38: #{tpu_custom_call.1} parent=1 // pred_check
      _
    $region39: #{tpu_custom_call.1} parent=1 // pred_check_branch
      %2066 = sbr.rel (0) target = $region41
    $region40: #{tpu_custom_call.1} parent=1 // pred_region
      %s2068 = ssub.s32 512, 512
      %2069 = vsyncadd [#allocation3], %s2068
      %s2070 = sshll.u32 [#allocation2], 4
      %s2071 = int_to_ptr.vmem [resolvable:$true] %s2070
      %2076 = dma.vmem_to_hbm [thread:$0]  %s2071, 512, %s9, [#allocation3], 128, 128, 8
    $region41: #{tpu_custom_call.1} parent=1 // pred_fallthru
      _
    // Predicated region
    $region42: #{tpu_custom_call.1} parent=1 // pred_check
      _
    $region43: #{tpu_custom_call.1} parent=1 // pred_check_branch
      %2078 = sbr.rel (0) target = $region45
    $region44: #{tpu_custom_call.1} parent=1 // pred_region
      %2079 = dma.done [#allocation3], 512
    $region45: #{tpu_custom_call.1} parent=1 // pred_fallthru
      _
    %2080 = vsyncpa [#allocation3], 1

</llo_original>
